<compile_context>
chip_gen: v7x
topology: tpu7x:2x2x1
jax: 0.10.0
libtpu: 0.0.40
codegen_flags: <defaults>
</compile_context>

<pallas_src>
import jax
import jax.numpy as jnp
import numpy as np
from jax.experimental import pallas as pl
from jax.experimental.pallas import tpu as pltpu

# ----------------------------- model dimensions ------------------------------
FIN = 16          # input_dim  (node feature dim)
C = 8             # hidden_dim (per-head output channels of GATv2Conv)
H = 4             # num_heads
D = C * H         # final_latent_dim = hidden_dim * num_heads = 32
A = 5             # output_dim (number of actions)
MLP_HID = 64      # hidden width of dueling Q / V MLPs
B = 2             # batch size
T = 4             # horizon (sequence length)
N = 8             # nodes per graph
G = B * T         # total graphs in the flattened batch
NEG_SLOPE = 0.2   # GATv2 LeakyReLU slope


# ------------------------------ fused Pallas kernel ----------------------------
def fused_kernel(xn_ref, xc_ref, mask_ref,
                 wrb_ref, brb_ref, wlb_ref, blb_ref, attm_ref, ssum_ref, bgat_ref,
                 wih_ref, whh_ref, blstm_ref,
                 wqv1_ref, bqv1_ref, wqv2_ref, bqv2_ref,
                 out_ref, h_ref, c_ref):
    """One grid step = one batch element: its T graphs, its LSTM, its dueling head."""
    # ---------------- GATv2Conv, lane-dense all-pairs layout -------------------
    # rows r = t*N + i (target node), lanes = j*D + d (source node j, head/channel d)
    hr_big = jnp.dot(xn_ref[0], wrb_ref[...],
                     preferred_element_type=jnp.float32) + brb_ref[...]          # (T*N, N*D)
    hl_big = jnp.dot(xc_ref[0], wlb_ref[...],
                     preferred_element_type=jnp.float32) + blb_ref[...]          # (T*N, N*D)
    s = hr_big + hl_big                                                          # s[(t,i),(j,d)]
    s = jnp.where(s > 0, s, NEG_SLOPE * s)                                       # LeakyReLU
    e = jnp.dot(s, attm_ref[...], preferred_element_type=jnp.float32)            # per-head score,
    #                                                                             replicated over channels
    # full-row max is constant over (j, d) for a fixed (t, i): it cancels exactly in y/l
    # and keeps every exp <= 1 (so the 0/1 mask-multiply can never hit inf*0).
    m = jnp.max(e, axis=1, keepdims=True)                                        # (T*N, 1)
    p = jnp.exp(e - m) * mask_ref[0]                                             # multiplicative edge mask

    # deferred softmax normalization: sum over neighbours j with one summation matmul
    both = jnp.dot(jnp.concatenate([p * hl_big, p], axis=0), ssum_ref[...],
                   preferred_element_type=jnp.float32)                           # (2*T*N, D)
    y_raw = both[:T * N]                                                         # sum_j p * hl
    l = both[T * N:]                                                             # sum_j p  (>0: self-loops)
    inv = pl.reciprocal(l, approx=True)
    inv = inv * (2.0 - l * inv)                                                  # one Newton step -> ~f32 exact
    y = jnp.maximum(y_raw * inv + bgat_ref[...], 0.0)                            # + bias, F.relu
    pooled = jnp.max(y.reshape(T, N, D), axis=1)                                 # (T, D) global_max_pool

    # ---------------- LSTM over this batch element's T steps -------------------
    # input->hidden projection hoisted out of the recurrence; gates packed [i, f, o, g]
    xp = jnp.dot(pooled, wih_ref[...], preferred_element_type=jnp.float32) + blstm_ref[...]   # (T, 4D)
    h = jnp.zeros((1, D), jnp.float32)
    c = jnp.zeros((1, D), jnp.float32)
    for t in range(T):                                                           # static unroll (T=4)
        gates = xp[t:t + 1, :] + jnp.dot(h, whh_ref[...],
                                         preferred_element_type=jnp.float32)     # (1, 4D)
        sig = jax.nn.sigmoid(gates[:, :3 * D])                                   # [i | f | o] in one pass
        g_g = jnp.tanh(gates[:, 3 * D:])
        c = sig[:, D:2 * D] * c + sig[:, :D] * g_g
        h = sig[:, 2 * D:3 * D] * jnp.tanh(c)

    # ---------------- dueling Q / V head (packed, lane-dense) ------------------
    hid = jnp.maximum(jnp.dot(h, wqv1_ref[...], preferred_element_type=jnp.float32)
                      + bqv1_ref[...], 0.0)                                      # (1, 2*MLP_HID)
    qv = jnp.dot(hid, wqv2_ref[...], preferred_element_type=jnp.float32) + bqv2_ref[...]       # (1, A+1)
    q = qv[:, :A]
    v = qv[:, A:A + 1]
    out_ref[...] = (q - jnp.mean(q, axis=1, keepdims=True) + v).reshape(1, 1, A)
    h_ref[...] = h.reshape(1, 1, D)
    c_ref[...] = c.reshape(1, 1, D)


# ------------------------------ weight packing ---------------------------------
def _pack_weights(p):
    """All layout plumbing done once, wrapper-side (XLA): kron/tiled GAT weights so the kernel's
    pair tensors come straight out of the MXU lane-dense, plus LSTM gate reorder and packed heads."""
    f32 = jnp.float32
    # GAT "target" projection replicated across the N neighbour lane-blocks
    wr_big = jnp.tile(p['wr'], (1, N))                                    # (FIN, N*D)
    br_big = jnp.tile(p['br'], (1, N))                                    # (1, N*D)
    # GAT "source" projection applied per neighbour slot: kron(I_N, wl) against the per-graph
    # feature row, so hl_big[(t,i),(j,d)] = (x[t,j] @ wl)[d] with no in-kernel relayout
    wl_big = jnp.kron(jnp.eye(N, dtype=f32), p['wl'])                     # (N*FIN, N*D)
    bl_big = jnp.tile(p['bl'], (1, N))                                    # (1, N*D)
    # per-head attention projector: block-diagonal (D, D), replicated per neighbour slot
    eye_h = jnp.eye(H, dtype=f32)
    att_sel = (p['att'][:, :, None] * eye_h[:, None, :]).reshape(D, H)    # (D, H)
    att_mat = att_sel @ jnp.repeat(eye_h, C, axis=1)                      # (D, D) block-diagonal
    attm_big = jnp.kron(jnp.eye(N, dtype=f32), att_mat)                   # (N*D, N*D)
    ssum = jnp.tile(jnp.eye(D, dtype=f32), (N, 1))                        # (N*D, D): sums over j
    # LSTM gates: PyTorch order [i, f, g, o] -> kernel order [i, f, o, g]
    reorder = lambda w: jnp.concatenate([w[:, :2 * D], w[:, 3 * D:], w[:, 2 * D:3 * D]], axis=1)
    w_ih, w_hh, b_lstm = reorder(p['w_ih']), reorder(p['w_hh']), reorder(p['b_lstm'])
    # dueling Q / V heads packed into two lane-dense matmuls
    wqv1 = jnp.concatenate([p['wq1'], p['wv1']], axis=1)                  # (D, 2*MLP_HID)
    bqv1 = jnp.concatenate([p['bq1'], p['bv1']], axis=1)                  # (1, 2*MLP_HID)
    wqv2 = jnp.zeros((2 * MLP_HID, A + 1), f32)
    wqv2 = wqv2.at[:MLP_HID, :A].set(p['wq2'])
    wqv2 = wqv2.at[MLP_HID:, A:].set(p['wv2'])                            # [[wq2, 0], [0, wv2]]
    bqv2 = jnp.concatenate([p['bq2'], p['bv2']], axis=1)                  # (1, A+1)
    return (wr_big, br_big, wl_big, bl_big, attm_big, ssum,
            w_ih, w_hh, b_lstm, wqv1, bqv1, wqv2, bqv2)


def _full_spec(shape):
    zeros = (0,) * len(shape)
    return pl.BlockSpec(shape, lambda b: zeros)


# ------------------------------ wrapper ---------------------------------------
@jax.jit
def forward(node_x, adj, params):
    """Equivalent of RecurrentHLDGNNetwork.forward with state=None.

    node_x: (G, N, FIN), g = b*T + t (batch-major, as the PyG batching would produce)
    adj:    (G, N, N) dense mask, adj[g, i, j] = 1 iff edge j -> i (self-loops included)
    """
    x4 = node_x.reshape(B, T, N, FIN)
    x_nodes = x4.reshape(B, T * N, FIN)                                   # per-row node features
    # per-graph feature row broadcast to every target row -> feeds kron(I_N, wl) directly
    x_ctx = jnp.broadcast_to(x4.reshape(B, T, 1, N * FIN),
                             (B, T, N, N * FIN)).reshape(B, T * N, N * FIN)
    # lane-dense 0/1 edge mask: mask[b, t*N+i, j*D+d] = adj[b*T+t, i, j]
    mask = jnp.repeat((adj > 0).astype(jnp.float32).reshape(B, T * N, N), D, axis=2)

    (wr_big, br_big, wl_big, bl_big, attm_big, ssum,
     w_ih, w_hh, b_lstm, wqv1, bqv1, wqv2, bqv2) = _pack_weights(params)

    out, h_T, c_T = pl.pallas_call(
        fused_kernel,
        grid_spec=pltpu.PrefetchScalarGridSpec(
            num_scalar_prefetch=0,
            grid=(B,),
            in_specs=[
                pl.BlockSpec((1, T * N, FIN), lambda b: (b, 0, 0)),
                pl.BlockSpec((1, T * N, N * FIN), lambda b: (b, 0, 0)),
                pl.BlockSpec((1, T * N, N * D), lambda b: (b, 0, 0)),
                _full_spec((FIN, N * D)), _full_spec((1, N * D)),
                _full_spec((N * FIN, N * D)), _full_spec((1, N * D)),
                _full_spec((N * D, N * D)), _full_spec((N * D, D)), _full_spec((1, D)),
                _full_spec((D, 4 * D)), _full_spec((D, 4 * D)), _full_spec((1, 4 * D)),
                _full_spec((D, 2 * MLP_HID)), _full_spec((1, 2 * MLP_HID)),
                _full_spec((2 * MLP_HID, A + 1)), _full_spec((1, A + 1)),
            ],
            out_specs=[
                pl.BlockSpec((1, 1, A), lambda b: (b, 0, 0)),
                pl.BlockSpec((1, 1, D), lambda b: (b, 0, 0)),
                pl.BlockSpec((1, 1, D), lambda b: (b, 0, 0)),
            ]),
        out_shape=(jax.ShapeDtypeStruct((B, 1, A), jnp.float32),
                   jax.ShapeDtypeStruct((B, 1, D), jnp.float32),
                   jax.ShapeDtypeStruct((B, 1, D), jnp.float32)),
        compiler_params=pltpu.CompilerParams(dimension_semantics=("parallel",)),
    )(x_nodes, x_ctx, mask,
      wr_big, br_big, wl_big, bl_big, attm_big, ssum, params['b_gat'],
      w_ih, w_hh, b_lstm, wqv1, bqv1, wqv2, bqv2)

    state = {'hidden': h_T,                      # hidden.transpose(0, 1) -> (bsz, 1, D)
             'cell': c_T}
    return out[:, 0, :], state


# ------------------------------ parameter init ---------------------------------
def init_params(key):
    ks = jax.random.split(key, 16)
    f = lambda k, shape, scale=0.1: (scale * jax.random.normal(k, shape)).astype(jnp.float32)
    return dict(
        # GATv2Conv(input_dim, hidden_dim, num_heads): lin_l, lin_r, att, bias
        wl=f(ks[0], (FIN, D)), bl=f(ks[1], (1, D)),
        wr=f(ks[2], (FIN, D)), br=f(ks[3], (1, D)),
        att=f(ks[4], (H, C)), b_gat=f(ks[5], (1, D)),
        # nn.LSTM(D, D, num_layers=1): weights stored [in, 4D], gate order [i,f,g,o];
        # bias = b_ih + b_hh fused
        w_ih=f(ks[6], (D, 4 * D)), w_hh=f(ks[7], (D, 4 * D)), b_lstm=f(ks[8], (1, 4 * D)),
        # dueling MLP heads: Linear(D, MLP_HID) -> ReLU -> Linear(MLP_HID, out)
        wq1=f(ks[9], (D, MLP_HID)), bq1=f(ks[10], (1, MLP_HID)),
        wq2=f(ks[11], (MLP_HID, A)), bq2=f(ks[12], (1, A)),
        wv1=f(ks[13], (D, MLP_HID)), bv1=f(ks[14], (1, MLP_HID)),
        wv2=f(ks[15], (MLP_HID, 1)), bv2=jnp.zeros((1, 1), jnp.float32),
    )


# ------------------------------ pure-JAX reference -----------------------------
def reference_forward(node_x, adj, p):
    hl = node_x @ p['wl'] + p['bl']                         # (G, N, D)
    hr = node_x @ p['wr'] + p['br']
    hl_h = hl.reshape(G, N, H, C)
    hr_h = hr.reshape(G, N, H, C)
    s = hr_h[:, :, None, :, :] + hl_h[:, None, :, :, :]     # (G, Ni, Nj, H, C)
    s = jnp.where(s > 0, s, NEG_SLOPE * s)
    e = jnp.einsum('gijhc,hc->gijh', s, p['att'])
    e = jnp.where(adj[..., None] > 0, e, -1e30)
    alpha = jax.nn.softmax(e, axis=2)
    y = jnp.einsum('gijh,gjhc->gihc', alpha, hl_h).reshape(G, N, D)
    y = jnp.maximum(y + p['b_gat'], 0.0)
    pooled = jnp.max(y, axis=1)                             # (G, D)
    x_seq = pooled.reshape(B, T, D)

    def step(carry, x_t):
        h, c = carry
        gates = x_t @ p['w_ih'] + h @ p['w_hh'] + p['b_lstm']
        i_g = jax.nn.sigmoid(gates[:, 0 * D:1 * D])
        f_g = jax.nn.sigmoid(gates[:, 1 * D:2 * D])
        g_g = jnp.tanh(gates[:, 2 * D:3 * D])
        o_g = jax.nn.sigmoid(gates[:, 3 * D:4 * D])
        c = f_g * c + i_g * g_g
        h = o_g * jnp.tanh(c)
        return (h, c), h

    (h_T, c_T), _ = jax.lax.scan(step,
                                 (jnp.zeros((B, D)), jnp.zeros((B, D))),
                                 jnp.transpose(x_seq, (1, 0, 2)))

    qh = jnp.maximum(h_T @ p['wq1'] + p['bq1'], 0.0)
    q = qh @ p['wq2'] + p['bq2']
    vh = jnp.maximum(h_T @ p['wv1'] + p['bv1'], 0.0)
    v = vh @ p['wv2'] + p['bv2']
    out = q - jnp.mean(q, axis=1, keepdims=True) + v
    return out, h_T, c_T


# ----------------------------------- main ---------------------------------------
if __name__ == "__main__":
    key = jax.random.PRNGKey(0)
    k_param, k_x, k_adj = jax.random.split(key, 3)
    params = init_params(k_param)

    node_x = jax.random.normal(k_x, (G, N, FIN), dtype=jnp.float32)
    adj = jax.random.bernoulli(k_adj, 0.5, (G, N, N)).astype(jnp.float32)
    adj = jnp.maximum(adj, jnp.eye(N, dtype=jnp.float32)[None])  # add_self_loops=True

    out, state = jax.block_until_ready(forward(node_x, adj, params))

    ref_out, ref_h, ref_c = reference_forward(node_x, adj, params)
    np.testing.assert_allclose(np.asarray(out), np.asarray(ref_out), rtol=1e-4, atol=1e-4)
    np.testing.assert_allclose(np.asarray(state['hidden'][:, 0]), np.asarray(ref_h),
                               rtol=1e-4, atol=1e-4)
    np.testing.assert_allclose(np.asarray(state['cell'][:, 0]), np.asarray(ref_c),
                               rtol=1e-4, atol=1e-4)
    print("KERNEL_OK")
</pallas_src>

<mosaic_0001>
module attributes {stable_mosaic.version = 11 : i64} {
  func.func @fused_kernel(%arg0: i32, %arg1: memref<1x32x16xf32, #tpu.memory_space<vmem>>, %arg2: memref<1x32x128xf32, #tpu.memory_space<vmem>>, %arg3: memref<1x32x256xf32, #tpu.memory_space<vmem>>, %arg4: memref<16x256xf32, #tpu.memory_space<vmem>>, %arg5: memref<1x256xf32, #tpu.memory_space<vmem>>, %arg6: memref<128x256xf32, #tpu.memory_space<vmem>>, %arg7: memref<1x256xf32, #tpu.memory_space<vmem>>, %arg8: memref<256x256xf32, #tpu.memory_space<vmem>>, %arg9: memref<256x32xf32, #tpu.memory_space<vmem>>, %arg10: memref<1x32xf32, #tpu.memory_space<vmem>>, %arg11: memref<32x128xf32, #tpu.memory_space<vmem>>, %arg12: memref<32x128xf32, #tpu.memory_space<vmem>>, %arg13: memref<1x128xf32, #tpu.memory_space<vmem>>, %arg14: memref<32x128xf32, #tpu.memory_space<vmem>>, %arg15: memref<1x128xf32, #tpu.memory_space<vmem>>, %arg16: memref<128x6xf32, #tpu.memory_space<vmem>>, %arg17: memref<1x6xf32, #tpu.memory_space<vmem>>, %arg18: memref<1x1x5xf32, #tpu.memory_space<vmem>>, %arg19: memref<1x1x32xf32, #tpu.memory_space<vmem>>, %arg20: memref<1x1x32xf32, #tpu.memory_space<vmem>>) attributes {dimension_semantics = [#tpu.dimension_semantics<parallel>], iteration_bounds = array<i64: 2>, scalar_prefetch = 0 : i64, scratch_operands = 0 : i64, tpu.core_type = #tpu.core_type<tc>, window_params = [{transform_indices = @transform_0, window_bounds = array<i64: 1, 32, 16>}, {transform_indices = @transform_1, window_bounds = array<i64: 1, 32, 128>}, {transform_indices = @transform_2, window_bounds = array<i64: 1, 32, 256>}, {pipeline_mode = #tpu.pipeline_mode<synchronous>, transform_indices = @transform_3, window_bounds = array<i64: 16, 256>}, {pipeline_mode = #tpu.pipeline_mode<synchronous>, transform_indices = @transform_4, window_bounds = array<i64: 1, 256>}, {pipeline_mode = #tpu.pipeline_mode<synchronous>, transform_indices = @transform_5, window_bounds = array<i64: 128, 256>}, {pipeline_mode = #tpu.pipeline_mode<synchronous>, transform_indices = @transform_6, window_bounds = array<i64: 1, 256>}, {pipeline_mode = #tpu.pipeline_mode<synchronous>, transform_indices = @transform_7, window_bounds = array<i64: 256, 256>}, {pipeline_mode = #tpu.pipeline_mode<synchronous>, transform_indices = @transform_8, window_bounds = array<i64: 256, 32>}, {pipeline_mode = #tpu.pipeline_mode<synchronous>, transform_indices = @transform_9, window_bounds = array<i64: 1, 32>}, {pipeline_mode = #tpu.pipeline_mode<synchronous>, transform_indices = @transform_10, window_bounds = array<i64: 32, 128>}, {pipeline_mode = #tpu.pipeline_mode<synchronous>, transform_indices = @transform_11, window_bounds = array<i64: 32, 128>}, {pipeline_mode = #tpu.pipeline_mode<synchronous>, transform_indices = @transform_12, window_bounds = array<i64: 1, 128>}, {pipeline_mode = #tpu.pipeline_mode<synchronous>, transform_indices = @transform_13, window_bounds = array<i64: 32, 128>}, {pipeline_mode = #tpu.pipeline_mode<synchronous>, transform_indices = @transform_14, window_bounds = array<i64: 1, 128>}, {pipeline_mode = #tpu.pipeline_mode<synchronous>, transform_indices = @transform_15, window_bounds = array<i64: 128, 6>}, {pipeline_mode = #tpu.pipeline_mode<synchronous>, transform_indices = @transform_16, window_bounds = array<i64: 1, 6>}, {transform_indices = @transform_17, window_bounds = array<i64: 1, 1, 5>}, {transform_indices = @transform_18, window_bounds = array<i64: 1, 1, 32>}, {transform_indices = @transform_19, window_bounds = array<i64: 1, 1, 32>}]} {
    %c0 = arith.constant 0 : index
    %c0_0 = arith.constant 0 : index
    %c0_1 = arith.constant 0 : index
    %0 = vector.load %arg1[%c0, %c0_0, %c0_1] : memref<1x32x16xf32, #tpu.memory_space<vmem>>, vector<1x32x16xf32>
    %1 = vector.shape_cast %0 : vector<1x32x16xf32> to vector<32x16xf32>
    %c0_2 = arith.constant 0 : index
    %c0_3 = arith.constant 0 : index
    %2 = vector.load %arg4[%c0_2, %c0_3] : memref<16x256xf32, #tpu.memory_space<vmem>>, vector<16x256xf32>
    %cst = arith.constant dense<0.000000e+00> : vector<32x256xf32>
    %3 = tpu.matmul %1, %2, %cst {dimension_numbers = #tpu.dot_dimension_numbers<[1], [0], [0], [1], [0, 0, 1, 1], [], []>} : vector<32x16xf32>, vector<16x256xf32>, vector<32x256xf32> -> vector<32x256xf32>
    %c0_4 = arith.constant 0 : index
    %c0_5 = arith.constant 0 : index
    %4 = vector.load %arg5[%c0_4, %c0_5] : memref<1x256xf32, #tpu.memory_space<vmem>>, vector<1x256xf32>
    %5 = vector.broadcast %4 : vector<1x256xf32> to vector<32x256xf32>
    %6 = arith.addf %3, %5 : vector<32x256xf32>
    %c0_6 = arith.constant 0 : index
    %c0_7 = arith.constant 0 : index
    %c0_8 = arith.constant 0 : index
    %7 = vector.load %arg2[%c0_6, %c0_7, %c0_8] : memref<1x32x128xf32, #tpu.memory_space<vmem>>, vector<1x32x128xf32>
    %8 = vector.shape_cast %7 : vector<1x32x128xf32> to vector<32x128xf32>
    %c0_9 = arith.constant 0 : index
    %c0_10 = arith.constant 0 : index
    %9 = vector.load %arg6[%c0_9, %c0_10] : memref<128x256xf32, #tpu.memory_space<vmem>>, vector<128x256xf32>
    %cst_11 = arith.constant dense<0.000000e+00> : vector<32x256xf32>
    %10 = tpu.matmul %8, %9, %cst_11 {dimension_numbers = #tpu.dot_dimension_numbers<[1], [0], [0], [1], [0, 0, 1, 1], [], []>} : vector<32x128xf32>, vector<128x256xf32>, vector<32x256xf32> -> vector<32x256xf32>
    %c0_12 = arith.constant 0 : index
    %c0_13 = arith.constant 0 : index
    %11 = vector.load %arg7[%c0_12, %c0_13] : memref<1x256xf32, #tpu.memory_space<vmem>>, vector<1x256xf32>
    %12 = vector.broadcast %11 : vector<1x256xf32> to vector<32x256xf32>
    %13 = arith.addf %10, %12 : vector<32x256xf32>
    %14 = arith.addf %6, %13 : vector<32x256xf32>
    %cst_14 = arith.constant 0.000000e+00 : f32
    %15 = vector.broadcast %cst_14 : f32 to vector<32x256xf32>
    %16 = arith.cmpf ogt, %14, %15 : vector<32x256xf32>
    %cst_15 = arith.constant 2.000000e-01 : f32
    %17 = vector.broadcast %cst_15 : f32 to vector<32x256xf32>
    %18 = arith.mulf %17, %14 : vector<32x256xf32>
    %19 = arith.select %16, %14, %18 : vector<32x256xi1>, vector<32x256xf32>
    %c0_16 = arith.constant 0 : index
    %c0_17 = arith.constant 0 : index
    %20 = vector.load %arg8[%c0_16, %c0_17] : memref<256x256xf32, #tpu.memory_space<vmem>>, vector<256x256xf32>
    %cst_18 = arith.constant dense<0.000000e+00> : vector<32x256xf32>
    %21 = tpu.matmul %19, %20, %cst_18 {dimension_numbers = #tpu.dot_dimension_numbers<[1], [0], [0], [1], [0, 0, 1, 1], [], []>} : vector<32x256xf32>, vector<256x256xf32>, vector<32x256xf32> -> vector<32x256xf32>
    %cst_19 = arith.constant dense<0xFF800000> : vector<32xf32>
    %22 = vector.multi_reduction <maximumf>, %21, %cst_19 [1] : vector<32x256xf32> to vector<32xf32>
    %23 = vector.shape_cast %22 : vector<32xf32> to vector<32x1xf32>
    %24 = vector.broadcast %23 : vector<32x1xf32> to vector<32x256xf32>
    %25 = arith.subf %21, %24 : vector<32x256xf32>
    %26 = math.exp %25 : vector<32x256xf32>
    %c0_20 = arith.constant 0 : index
    %c0_21 = arith.constant 0 : index
    %c0_22 = arith.constant 0 : index
    %27 = vector.load %arg3[%c0_20, %c0_21, %c0_22] : memref<1x32x256xf32, #tpu.memory_space<vmem>>, vector<1x32x256xf32>
    %28 = vector.shape_cast %27 : vector<1x32x256xf32> to vector<32x256xf32>
    %29 = arith.mulf %26, %28 : vector<32x256xf32>
    %30 = arith.mulf %29, %13 : vector<32x256xf32>
    %31 = tpu.concatenate %30, %29 in 0 : vector<32x256xf32>, vector<32x256xf32> -> vector<64x256xf32>
    %c0_23 = arith.constant 0 : index
    %c0_24 = arith.constant 0 : index
    %32 = vector.load %arg9[%c0_23, %c0_24] : memref<256x32xf32, #tpu.memory_space<vmem>>, vector<256x32xf32>
    %cst_25 = arith.constant dense<0.000000e+00> : vector<64x32xf32>
    %33 = tpu.matmul %31, %32, %cst_25 {dimension_numbers = #tpu.dot_dimension_numbers<[1], [0], [0], [1], [0, 0, 1, 1], [], []>} : vector<64x256xf32>, vector<256x32xf32>, vector<64x32xf32> -> vector<64x32xf32>
    %34 = vector.extract_strided_slice %33 {offsets = [0, 0], sizes = [32, 32], strides = [1, 1]} : vector<64x32xf32> to vector<32x32xf32>
    %35 = vector.extract_strided_slice %33 {offsets = [32, 0], sizes = [32, 32], strides = [1, 1]} : vector<64x32xf32> to vector<32x32xf32>
    %36 = tpu.reciprocal %35 {approx = true} : vector<32x32xf32> -> vector<32x32xf32>
    %37 = arith.mulf %35, %36 : vector<32x32xf32>
    %cst_26 = arith.constant 2.000000e+00 : f32
    %38 = vector.broadcast %cst_26 : f32 to vector<32x32xf32>
    %39 = arith.subf %38, %37 : vector<32x32xf32>
    %40 = arith.mulf %36, %39 : vector<32x32xf32>
    %41 = arith.mulf %34, %40 : vector<32x32xf32>
    %c0_27 = arith.constant 0 : index
    %c0_28 = arith.constant 0 : index
    %42 = vector.load %arg10[%c0_27, %c0_28] : memref<1x32xf32, #tpu.memory_space<vmem>>, vector<1x32xf32>
    %43 = vector.broadcast %42 : vector<1x32xf32> to vector<32x32xf32>
    %44 = arith.addf %41, %43 : vector<32x32xf32>
    %cst_29 = arith.constant 0.000000e+00 : f32
    %45 = vector.broadcast %cst_29 : f32 to vector<32x32xf32>
    %46 = arith.maximumf %44, %45 : vector<32x32xf32>
    %47 = vector.shape_cast %46 : vector<32x32xf32> to vector<4x8x32xf32>
    %cst_30 = arith.constant dense<0xFF800000> : vector<4x32xf32>
    %48 = vector.multi_reduction <maximumf>, %47, %cst_30 [1] : vector<4x8x32xf32> to vector<4x32xf32>
    %c0_31 = arith.constant 0 : index
    %c0_32 = arith.constant 0 : index
    %49 = vector.load %arg11[%c0_31, %c0_32] : memref<32x128xf32, #tpu.memory_space<vmem>>, vector<32x128xf32>
    %cst_33 = arith.constant dense<0.000000e+00> : vector<4x128xf32>
    %50 = tpu.matmul %48, %49, %cst_33 {dimension_numbers = #tpu.dot_dimension_numbers<[1], [0], [0], [1], [0, 0, 1, 1], [], []>} : vector<4x32xf32>, vector<32x128xf32>, vector<4x128xf32> -> vector<4x128xf32>
    %c0_34 = arith.constant 0 : index
    %c0_35 = arith.constant 0 : index
    %51 = vector.load %arg13[%c0_34, %c0_35] : memref<1x128xf32, #tpu.memory_space<vmem>>, vector<1x128xf32>
    %52 = vector.broadcast %51 : vector<1x128xf32> to vector<4x128xf32>
    %53 = arith.addf %50, %52 : vector<4x128xf32>
    %cst_36 = arith.constant 0.000000e+00 : f32
    %54 = vector.broadcast %cst_36 : f32 to vector<1x32xf32>
    %cst_37 = arith.constant 0.000000e+00 : f32
    %55 = vector.broadcast %cst_37 : f32 to vector<1x32xf32>
    %56 = vector.extract_strided_slice %53 {offsets = [0, 0], sizes = [1, 128], strides = [1, 1]} : vector<4x128xf32> to vector<1x128xf32>
    %c0_38 = arith.constant 0 : index
    %c0_39 = arith.constant 0 : index
    %57 = vector.load %arg12[%c0_38, %c0_39] : memref<32x128xf32, #tpu.memory_space<vmem>>, vector<32x128xf32>
    %cst_40 = arith.constant dense<0.000000e+00> : vector<1x128xf32>
    %58 = tpu.matmul %54, %57, %cst_40 {dimension_numbers = #tpu.dot_dimension_numbers<[1], [0], [0], [1], [0, 0, 1, 1], [], []>} : vector<1x32xf32>, vector<32x128xf32>, vector<1x128xf32> -> vector<1x128xf32>
    %59 = arith.addf %56, %58 : vector<1x128xf32>
    %60 = vector.extract_strided_slice %59 {offsets = [0, 0], sizes = [1, 96], strides = [1, 1]} : vector<1x128xf32> to vector<1x96xf32>
    %61 = arith.negf %60 : vector<1x96xf32>
    %62 = math.exp %61 : vector<1x96xf32>
    %cst_41 = arith.constant 1.000000e+00 : f32
    %63 = vector.broadcast %cst_41 : f32 to vector<1x96xf32>
    %64 = arith.addf %63, %62 : vector<1x96xf32>
    %65 = arith.divf %63, %64 : vector<1x96xf32>
    %66 = vector.extract_strided_slice %59 {offsets = [0, 96], sizes = [1, 32], strides = [1, 1]} : vector<1x128xf32> to vector<1x32xf32>
    %67 = math.tanh %66 : vector<1x32xf32>
    %68 = vector.extract_strided_slice %65 {offsets = [0, 32], sizes = [1, 32], strides = [1, 1]} : vector<1x96xf32> to vector<1x32xf32>
    %69 = arith.mulf %68, %55 : vector<1x32xf32>
    %70 = vector.extract_strided_slice %65 {offsets = [0, 0], sizes = [1, 32], strides = [1, 1]} : vector<1x96xf32> to vector<1x32xf32>
    %71 = arith.mulf %70, %67 : vector<1x32xf32>
    %72 = arith.addf %69, %71 : vector<1x32xf32>
    %73 = vector.extract_strided_slice %65 {offsets = [0, 64], sizes = [1, 32], strides = [1, 1]} : vector<1x96xf32> to vector<1x32xf32>
    %74 = math.tanh %72 : vector<1x32xf32>
    %75 = arith.mulf %73, %74 : vector<1x32xf32>
    %76 = vector.extract_strided_slice %53 {offsets = [1, 0], sizes = [1, 128], strides = [1, 1]} : vector<4x128xf32> to vector<1x128xf32>
    %c0_42 = arith.constant 0 : index
    %c0_43 = arith.constant 0 : index
    %77 = vector.load %arg12[%c0_42, %c0_43] : memref<32x128xf32, #tpu.memory_space<vmem>>, vector<32x128xf32>
    %cst_44 = arith.constant dense<0.000000e+00> : vector<1x128xf32>
    %78 = tpu.matmul %75, %77, %cst_44 {dimension_numbers = #tpu.dot_dimension_numbers<[1], [0], [0], [1], [0, 0, 1, 1], [], []>} : vector<1x32xf32>, vector<32x128xf32>, vector<1x128xf32> -> vector<1x128xf32>
    %79 = arith.addf %76, %78 : vector<1x128xf32>
    %80 = vector.extract_strided_slice %79 {offsets = [0, 0], sizes = [1, 96], strides = [1, 1]} : vector<1x128xf32> to vector<1x96xf32>
    %81 = arith.negf %80 : vector<1x96xf32>
    %82 = math.exp %81 : vector<1x96xf32>
    %cst_45 = arith.constant 1.000000e+00 : f32
    %83 = vector.broadcast %cst_45 : f32 to vector<1x96xf32>
    %84 = arith.addf %83, %82 : vector<1x96xf32>
    %85 = arith.divf %83, %84 : vector<1x96xf32>
    %86 = vector.extract_strided_slice %79 {offsets = [0, 96], sizes = [1, 32], strides = [1, 1]} : vector<1x128xf32> to vector<1x32xf32>
    %87 = math.tanh %86 : vector<1x32xf32>
    %88 = vector.extract_strided_slice %85 {offsets = [0, 32], sizes = [1, 32], strides = [1, 1]} : vector<1x96xf32> to vector<1x32xf32>
    %89 = arith.mulf %88, %72 : vector<1x32xf32>
    %90 = vector.extract_strided_slice %85 {offsets = [0, 0], sizes = [1, 32], strides = [1, 1]} : vector<1x96xf32> to vector<1x32xf32>
    %91 = arith.mulf %90, %87 : vector<1x32xf32>
    %92 = arith.addf %89, %91 : vector<1x32xf32>
    %93 = vector.extract_strided_slice %85 {offsets = [0, 64], sizes = [1, 32], strides = [1, 1]} : vector<1x96xf32> to vector<1x32xf32>
    %94 = math.tanh %92 : vector<1x32xf32>
    %95 = arith.mulf %93, %94 : vector<1x32xf32>
    %96 = vector.extract_strided_slice %53 {offsets = [2, 0], sizes = [1, 128], strides = [1, 1]} : vector<4x128xf32> to vector<1x128xf32>
    %c0_46 = arith.constant 0 : index
    %c0_47 = arith.constant 0 : index
    %97 = vector.load %arg12[%c0_46, %c0_47] : memref<32x128xf32, #tpu.memory_space<vmem>>, vector<32x128xf32>
    %cst_48 = arith.constant dense<0.000000e+00> : vector<1x128xf32>
    %98 = tpu.matmul %95, %97, %cst_48 {dimension_numbers = #tpu.dot_dimension_numbers<[1], [0], [0], [1], [0, 0, 1, 1], [], []>} : vector<1x32xf32>, vector<32x128xf32>, vector<1x128xf32> -> vector<1x128xf32>
    %99 = arith.addf %96, %98 : vector<1x128xf32>
    %100 = vector.extract_strided_slice %99 {offsets = [0, 0], sizes = [1, 96], strides = [1, 1]} : vector<1x128xf32> to vector<1x96xf32>
    %101 = arith.negf %100 : vector<1x96xf32>
    %102 = math.exp %101 : vector<1x96xf32>
    %cst_49 = arith.constant 1.000000e+00 : f32
    %103 = vector.broadcast %cst_49 : f32 to vector<1x96xf32>
    %104 = arith.addf %103, %102 : vector<1x96xf32>
    %105 = arith.divf %103, %104 : vector<1x96xf32>
    %106 = vector.extract_strided_slice %99 {offsets = [0, 96], sizes = [1, 32], strides = [1, 1]} : vector<1x128xf32> to vector<1x32xf32>
    %107 = math.tanh %106 : vector<1x32xf32>
    %108 = vector.extract_strided_slice %105 {offsets = [0, 32], sizes = [1, 32], strides = [1, 1]} : vector<1x96xf32> to vector<1x32xf32>
    %109 = arith.mulf %108, %92 : vector<1x32xf32>
    %110 = vector.extract_strided_slice %105 {offsets = [0, 0], sizes = [1, 32], strides = [1, 1]} : vector<1x96xf32> to vector<1x32xf32>
    %111 = arith.mulf %110, %107 : vector<1x32xf32>
    %112 = arith.addf %109, %111 : vector<1x32xf32>
    %113 = vector.extract_strided_slice %105 {offsets = [0, 64], sizes = [1, 32], strides = [1, 1]} : vector<1x96xf32> to vector<1x32xf32>
    %114 = math.tanh %112 : vector<1x32xf32>
    %115 = arith.mulf %113, %114 : vector<1x32xf32>
    %116 = vector.extract_strided_slice %53 {offsets = [3, 0], sizes = [1, 128], strides = [1, 1]} : vector<4x128xf32> to vector<1x128xf32>
    %c0_50 = arith.constant 0 : index
    %c0_51 = arith.constant 0 : index
    %117 = vector.load %arg12[%c0_50, %c0_51] : memref<32x128xf32, #tpu.memory_space<vmem>>, vector<32x128xf32>
    %cst_52 = arith.constant dense<0.000000e+00> : vector<1x128xf32>
    %118 = tpu.matmul %115, %117, %cst_52 {dimension_numbers = #tpu.dot_dimension_numbers<[1], [0], [0], [1], [0, 0, 1, 1], [], []>} : vector<1x32xf32>, vector<32x128xf32>, vector<1x128xf32> -> vector<1x128xf32>
    %119 = arith.addf %116, %118 : vector<1x128xf32>
    %120 = vector.extract_strided_slice %119 {offsets = [0, 0], sizes = [1, 96], strides = [1, 1]} : vector<1x128xf32> to vector<1x96xf32>
    %121 = arith.negf %120 : vector<1x96xf32>
    %122 = math.exp %121 : vector<1x96xf32>
    %cst_53 = arith.constant 1.000000e+00 : f32
    %123 = vector.broadcast %cst_53 : f32 to vector<1x96xf32>
    %124 = arith.addf %123, %122 : vector<1x96xf32>
    %125 = arith.divf %123, %124 : vector<1x96xf32>
    %126 = vector.extract_strided_slice %119 {offsets = [0, 96], sizes = [1, 32], strides = [1, 1]} : vector<1x128xf32> to vector<1x32xf32>
    %127 = math.tanh %126 : vector<1x32xf32>
    %128 = vector.extract_strided_slice %125 {offsets = [0, 32], sizes = [1, 32], strides = [1, 1]} : vector<1x96xf32> to vector<1x32xf32>
    %129 = arith.mulf %128, %112 : vector<1x32xf32>
    %130 = vector.extract_strided_slice %125 {offsets = [0, 0], sizes = [1, 32], strides = [1, 1]} : vector<1x96xf32> to vector<1x32xf32>
    %131 = arith.mulf %130, %127 : vector<1x32xf32>
    %132 = arith.addf %129, %131 : vector<1x32xf32>
    %133 = vector.extract_strided_slice %125 {offsets = [0, 64], sizes = [1, 32], strides = [1, 1]} : vector<1x96xf32> to vector<1x32xf32>
    %134 = math.tanh %132 : vector<1x32xf32>
    %135 = arith.mulf %133, %134 : vector<1x32xf32>
    %c0_54 = arith.constant 0 : index
    %c0_55 = arith.constant 0 : index
    %136 = vector.load %arg14[%c0_54, %c0_55] : memref<32x128xf32, #tpu.memory_space<vmem>>, vector<32x128xf32>
    %cst_56 = arith.constant dense<0.000000e+00> : vector<1x128xf32>
    %137 = tpu.matmul %135, %136, %cst_56 {dimension_numbers = #tpu.dot_dimension_numbers<[1], [0], [0], [1], [0, 0, 1, 1], [], []>} : vector<1x32xf32>, vector<32x128xf32>, vector<1x128xf32> -> vector<1x128xf32>
    %c0_57 = arith.constant 0 : index
    %c0_58 = arith.constant 0 : index
    %138 = vector.load %arg15[%c0_57, %c0_58] : memref<1x128xf32, #tpu.memory_space<vmem>>, vector<1x128xf32>
    %139 = arith.addf %137, %138 : vector<1x128xf32>
    %cst_59 = arith.constant 0.000000e+00 : f32
    %140 = vector.broadcast %cst_59 : f32 to vector<1x128xf32>
    %141 = arith.maximumf %139, %140 : vector<1x128xf32>
    %c0_60 = arith.constant 0 : index
    %c0_61 = arith.constant 0 : index
    %142 = vector.load %arg16[%c0_60, %c0_61] : memref<128x6xf32, #tpu.memory_space<vmem>>, vector<128x6xf32>
    %cst_62 = arith.constant dense<0.000000e+00> : vector<1x6xf32>
    %143 = tpu.matmul %141, %142, %cst_62 {dimension_numbers = #tpu.dot_dimension_numbers<[1], [0], [0], [1], [0, 0, 1, 1], [], []>} : vector<1x128xf32>, vector<128x6xf32>, vector<1x6xf32> -> vector<1x6xf32>
    %c0_63 = arith.constant 0 : index
    %c0_64 = arith.constant 0 : index
    %144 = vector.load %arg17[%c0_63, %c0_64] : memref<1x6xf32, #tpu.memory_space<vmem>>, vector<1x6xf32>
    %145 = arith.addf %143, %144 : vector<1x6xf32>
    %146 = vector.extract_strided_slice %145 {offsets = [0, 0], sizes = [1, 5], strides = [1, 1]} : vector<1x6xf32> to vector<1x5xf32>
    %147 = vector.extract_strided_slice %145 {offsets = [0, 5], sizes = [1, 1], strides = [1, 1]} : vector<1x6xf32> to vector<1x1xf32>
    %cst_65 = arith.constant dense<0.000000e+00> : vector<1xf32>
    %148 = vector.multi_reduction <add>, %146, %cst_65 [1] : vector<1x5xf32> to vector<1xf32>
    %149 = vector.shape_cast %148 : vector<1xf32> to vector<1x1xf32>
    %cst_66 = arith.constant 5.000000e+00 : f32
    %150 = vector.broadcast %cst_66 : f32 to vector<1x1xf32>
    %151 = arith.divf %149, %150 : vector<1x1xf32>
    %152 = vector.broadcast %151 : vector<1x1xf32> to vector<1x5xf32>
    %153 = arith.subf %146, %152 : vector<1x5xf32>
    %154 = vector.broadcast %147 : vector<1x1xf32> to vector<1x5xf32>
    %155 = arith.addf %153, %154 : vector<1x5xf32>
    %156 = vector.shape_cast %155 : vector<1x5xf32> to vector<1x1x5xf32>
    %c0_67 = arith.constant 0 : index
    %c0_68 = arith.constant 0 : index
    %c0_69 = arith.constant 0 : index
    %157 = vector.load %arg18[%c0_67, %c0_68, %c0_69] : memref<1x1x5xf32, #tpu.memory_space<vmem>>, vector<1x1x5xf32>
    tpu.vector_store %arg18[%c0_67, %c0_68, %c0_69], %156 {strides = array<i32>} : memref<1x1x5xf32, #tpu.memory_space<vmem>>, vector<1x1x5xf32>,
    %158 = vector.shape_cast %135 : vector<1x32xf32> to vector<1x1x32xf32>
    %c0_70 = arith.constant 0 : index
    %c0_71 = arith.constant 0 : index
    %c0_72 = arith.constant 0 : index
    %159 = vector.load %arg19[%c0_70, %c0_71, %c0_72] : memref<1x1x32xf32, #tpu.memory_space<vmem>>, vector<1x1x32xf32>
    tpu.vector_store %arg19[%c0_70, %c0_71, %c0_72], %158 {strides = array<i32>} : memref<1x1x32xf32, #tpu.memory_space<vmem>>, vector<1x1x32xf32>,
    %160 = vector.shape_cast %132 : vector<1x32xf32> to vector<1x1x32xf32>
    %c0_73 = arith.constant 0 : index
    %c0_74 = arith.constant 0 : index
    %c0_75 = arith.constant 0 : index
    %161 = vector.load %arg20[%c0_73, %c0_74, %c0_75] : memref<1x1x32xf32, #tpu.memory_space<vmem>>, vector<1x1x32xf32>
    tpu.vector_store %arg20[%c0_73, %c0_74, %c0_75], %160 {strides = array<i32>} : memref<1x1x32xf32, #tpu.memory_space<vmem>>, vector<1x1x32xf32>,
    return
  }
  func.func @transform_0(%arg0: i32) -> (i32, i32, i32) {
    %c0_i32 = arith.constant 0 : i32
    %c0_i32_0 = arith.constant 0 : i32
    %c0_i32_1 = arith.constant 0 : i32
    return %arg0, %c0_i32, %c0_i32_0 : i32, i32, i32
  }
  func.func @transform_1(%arg0: i32) -> (i32, i32, i32) {
    %c0_i32 = arith.constant 0 : i32
    %c0_i32_0 = arith.constant 0 : i32
    %c0_i32_1 = arith.constant 0 : i32
    return %arg0, %c0_i32, %c0_i32_0 : i32, i32, i32
  }
  func.func @transform_2(%arg0: i32) -> (i32, i32, i32) {
    %c0_i32 = arith.constant 0 : i32
    %c0_i32_0 = arith.constant 0 : i32
    %c0_i32_1 = arith.constant 0 : i32
    return %arg0, %c0_i32, %c0_i32_0 : i32, i32, i32
  }
  func.func @transform_3(%arg0: i32) -> (i32, i32) {
    %c0_i32 = arith.constant 0 : i32
    %c0_i32_0 = arith.constant 0 : i32
    %c0_i32_1 = arith.constant 0 : i32
    return %c0_i32, %c0_i32_0 : i32, i32
  }
  func.func @transform_4(%arg0: i32) -> (i32, i32) {
    %c0_i32 = arith.constant 0 : i32
    %c0_i32_0 = arith.constant 0 : i32
    %c0_i32_1 = arith.constant 0 : i32
    return %c0_i32, %c0_i32_0 : i32, i32
  }
  func.func @transform_5(%arg0: i32) -> (i32, i32) {
    %c0_i32 = arith.constant 0 : i32
    %c0_i32_0 = arith.constant 0 : i32
    %c0_i32_1 = arith.constant 0 : i32
    return %c0_i32, %c0_i32_0 : i32, i32
  }
  func.func @transform_6(%arg0: i32) -> (i32, i32) {
    %c0_i32 = arith.constant 0 : i32
    %c0_i32_0 = arith.constant 0 : i32
    %c0_i32_1 = arith.constant 0 : i32
    return %c0_i32, %c0_i32_0 : i32, i32
  }
  func.func @transform_7(%arg0: i32) -> (i32, i32) {
    %c0_i32 = arith.constant 0 : i32
    %c0_i32_0 = arith.constant 0 : i32
    %c0_i32_1 = arith.constant 0 : i32
    return %c0_i32, %c0_i32_0 : i32, i32
  }
  func.func @transform_8(%arg0: i32) -> (i32, i32) {
    %c0_i32 = arith.constant 0 : i32
    %c0_i32_0 = arith.constant 0 : i32
    %c0_i32_1 = arith.constant 0 : i32
    return %c0_i32, %c0_i32_0 : i32, i32
  }
  func.func @transform_9(%arg0: i32) -> (i32, i32) {
    %c0_i32 = arith.constant 0 : i32
    %c0_i32_0 = arith.constant 0 : i32
    %c0_i32_1 = arith.constant 0 : i32
    return %c0_i32, %c0_i32_0 : i32, i32
  }
  func.func @transform_10(%arg0: i32) -> (i32, i32) {
    %c0_i32 = arith.constant 0 : i32
    %c0_i32_0 = arith.constant 0 : i32
    %c0_i32_1 = arith.constant 0 : i32
    return %c0_i32, %c0_i32_0 : i32, i32
  }
  func.func @transform_11(%arg0: i32) -> (i32, i32) {
    %c0_i32 = arith.constant 0 : i32
    %c0_i32_0 = arith.constant 0 : i32
    %c0_i32_1 = arith.constant 0 : i32
    return %c0_i32, %c0_i32_0 : i32, i32
  }
  func.func @transform_12(%arg0: i32) -> (i32, i32) {
    %c0_i32 = arith.constant 0 : i32
    %c0_i32_0 = arith.constant 0 : i32
    %c0_i32_1 = arith.constant 0 : i32
    return %c0_i32, %c0_i32_0 : i32, i32
  }
  func.func @transform_13(%arg0: i32) -> (i32, i32) {
    %c0_i32 = arith.constant 0 : i32
    %c0_i32_0 = arith.constant 0 : i32
    %c0_i32_1 = arith.constant 0 : i32
    return %c0_i32, %c0_i32_0 : i32, i32
  }
  func.func @transform_14(%arg0: i32) -> (i32, i32) {
    %c0_i32 = arith.constant 0 : i32
    %c0_i32_0 = arith.constant 0 : i32
    %c0_i32_1 = arith.constant 0 : i32
    return %c0_i32, %c0_i32_0 : i32, i32
  }
  func.func @transform_15(%arg0: i32) -> (i32, i32) {
    %c0_i32 = arith.constant 0 : i32
    %c0_i32_0 = arith.constant 0 : i32
    %c0_i32_1 = arith.constant 0 : i32
    return %c0_i32, %c0_i32_0 : i32, i32
  }
  func.func @transform_16(%arg0: i32) -> (i32, i32) {
    %c0_i32 = arith.constant 0 : i32
    %c0_i32_0 = arith.constant 0 : i32
    %c0_i32_1 = arith.constant 0 : i32
    return %c0_i32, %c0_i32_0 : i32, i32
  }
  func.func @transform_17(%arg0: i32) -> (i32, i32, i32) {
    %c0_i32 = arith.constant 0 : i32
    %c0_i32_0 = arith.constant 0 : i32
    %c0_i32_1 = arith.constant 0 : i32
    return %arg0, %c0_i32, %c0_i32_0 : i32, i32, i32
  }
  func.func @transform_18(%arg0: i32) -> (i32, i32, i32) {
    %c0_i32 = arith.constant 0 : i32
    %c0_i32_0 = arith.constant 0 : i32
    %c0_i32_1 = arith.constant 0 : i32
    return %arg0, %c0_i32, %c0_i32_0 : i32, i32, i32
  }
  func.func @transform_19(%arg0: i32) -> (i32, i32, i32) {
    %c0_i32 = arith.constant 0 : i32
    %c0_i32_0 = arith.constant 0 : i32
    %c0_i32_1 = arith.constant 0 : i32
    return %arg0, %c0_i32, %c0_i32_0 : i32, i32, i32
  }
}

</mosaic_0001>

<llo_original>
// kernel: tile.24
$region0: #{tile.24}
  %s0 = inlined_call_operand.vmem [shape: f32[16,8,32], index: 0, kind: input, shape index: {}]
  %s1 = inlined_call_operand.vmem [shape: f32[16,256], index: 1, kind: output, shape index: {}]
  %v2 = vld [vmem:[%s0] ss:$4 sm:$0xff]
  %vm3 = vcmask 261120
  %4 = vst.msk [vmem:[%s1] ss:$8 sm:$0x3] %vm3, %v2
  %s5 = scalar_lea.vmem %s1, 4294967281
  %6 = vst.msk [vmem:[%s5] ss:$8 sm:$0xc] %vm3, %v2
  %s7 = scalar_lea.vmem %s1, 4294967266
  %8 = vst.msk [vmem:[%s7] ss:$8 sm:$0x30] %vm3, %v2
  %s9 = scalar_lea.vmem %s1, 4294967251
  %10 = vst.msk [vmem:[%s9] ss:$8 sm:$0xc0] %vm3, %v2
  %s11 = scalar_lea.vmem %s0, 32
  %v12 = vld [vmem:[%s11] ss:$4 sm:$0xff]
  %vm13 = vcmask 261120
  %s14 = scalar_lea.vmem %s1, 4
  %15 = vst.msk [vmem:[%s14] ss:$8 sm:$0x3] %vm13, %v12
  %s16 = scalar_lea.vmem %s1, 4294967285
  %17 = vst.msk [vmem:[%s16] ss:$8 sm:$0xc] %vm13, %v12
  %s18 = scalar_lea.vmem %s1, 4294967270
  %19 = vst.msk [vmem:[%s18] ss:$8 sm:$0x30] %vm13, %v12
  %s20 = scalar_lea.vmem %s1, 4294967255
  %21 = vst.msk [vmem:[%s20] ss:$8 sm:$0xc0] %vm13, %v12
  %s22 = scalar_lea.vmem %s0, 64
  %v23 = vld [vmem:[%s22] ss:$4 sm:$0xff]
  %vm24 = vcmask 261120
  %s25 = scalar_lea.vmem %s1, 16
  %26 = vst.msk [vmem:[%s25] ss:$8 sm:$0x3] %vm24, %v23
  %s27 = scalar_lea.vmem %s1, 1
  %28 = vst.msk [vmem:[%s27] ss:$8 sm:$0xc] %vm24, %v23
  %s29 = scalar_lea.vmem %s1, 4294967282
  %30 = vst.msk [vmem:[%s29] ss:$8 sm:$0x30] %vm24, %v23
  %s31 = scalar_lea.vmem %s1, 4294967267
  %32 = vst.msk [vmem:[%s31] ss:$8 sm:$0xc0] %vm24, %v23
  %s33 = scalar_lea.vmem %s0, 96
  %v34 = vld [vmem:[%s33] ss:$4 sm:$0xff]
  %vm35 = vcmask 261120
  %s36 = scalar_lea.vmem %s1, 20
  %37 = vst.msk [vmem:[%s36] ss:$8 sm:$0x3] %vm35, %v34
  %s38 = scalar_lea.vmem %s1, 5
  %39 = vst.msk [vmem:[%s38] ss:$8 sm:$0xc] %vm35, %v34
  %s40 = scalar_lea.vmem %s1, 4294967286
  %41 = vst.msk [vmem:[%s40] ss:$8 sm:$0x30] %vm35, %v34
  %s42 = scalar_lea.vmem %s1, 4294967271
  %43 = vst.msk [vmem:[%s42] ss:$8 sm:$0xc0] %vm35, %v34
  %s44 = scalar_lea.vmem %s0, 3
  %v45 = vld [vmem:[%s44] ss:$8 sm:$0xf]
  %s46 = scalar_lea.vmem %s0, 3
  %v47 = vld [vmem:[%s46] ss:$8 sm:$0xf0]
  %vm48 = vcmask 1047556
  %v49 = vsel %vm48, %v47, %v45
  %50 = vrot.lane.b32.xlu0 %v49, 96
  %v51 = vpop.permute.xlu0 %50
  %vm52 = vcmask 1048320
  %53 = vst.msk [vmem:[%s1] sm:$0xff] %vm52, %v51
  %s54 = scalar_lea.vmem %s0, 7
  %v55 = vld [vmem:[%s54] ss:$8 sm:$0xf]
  %s56 = scalar_lea.vmem %s0, 7
  %v57 = vld [vmem:[%s56] ss:$8 sm:$0xf0]
  %vm58 = vcmask 1047556
  %v59 = vsel %vm58, %v57, %v55
  %60 = vrot.lane.b32.xlu0 %v59, 96
  %v61 = vpop.permute.xlu0 %60
  %vm62 = vcmask 1048320
  %s63 = scalar_lea.vmem %s1, 8
  %64 = vst.msk [vmem:[%s63] sm:$0xff] %vm62, %v61
  %s65 = scalar_lea.vmem %s0, 67
  %v66 = vld [vmem:[%s65] ss:$8 sm:$0xf]
  %s67 = scalar_lea.vmem %s0, 67
  %v68 = vld [vmem:[%s67] ss:$8 sm:$0xf0]
  %vm69 = vcmask 1047556
  %v70 = vsel %vm69, %v68, %v66
  %71 = vrot.lane.b32.xlu0 %v70, 96
  %v72 = vpop.permute.xlu0 %71
  %vm73 = vcmask 1048320
  %s74 = scalar_lea.vmem %s1, 16
  %75 = vst.msk [vmem:[%s74] sm:$0xff] %vm73, %v72
  %s76 = scalar_lea.vmem %s0, 71
  %v77 = vld [vmem:[%s76] ss:$8 sm:$0xf]
  %s78 = scalar_lea.vmem %s0, 71
  %v79 = vld [vmem:[%s78] ss:$8 sm:$0xf0]
  %vm80 = vcmask 1047556
  %v81 = vsel %vm80, %v79, %v77
  %82 = vrot.lane.b32.xlu0 %v81, 96
  %v83 = vpop.permute.xlu0 %82
  %vm84 = vcmask 1048320
  %s85 = scalar_lea.vmem %s1, 24
  %86 = vst.msk [vmem:[%s85] sm:$0xff] %vm84, %v83
  %s87 = scalar_lea.vmem %s0, 2
  %v88 = vld [vmem:[%s87] ss:$8 sm:$0xf]
  %s89 = scalar_lea.vmem %s0, 2
  %v90 = vld [vmem:[%s89] ss:$8 sm:$0xf0]
  %vm91 = vcmask 1047556
  %v92 = vsel %vm91, %v90, %v88
  %93 = vrot.lane.b32.xlu0 %v92, 64
  %v94 = vpop.permute.xlu0 %93
  %vm95 = vcmask 785920
  %96 = vst.msk [vmem:[%s1] sm:$0xff] %vm95, %v94
  %s97 = scalar_lea.vmem %s0, 6
  %v98 = vld [vmem:[%s97] ss:$8 sm:$0xf]
  %s99 = scalar_lea.vmem %s0, 6
  %v100 = vld [vmem:[%s99] ss:$8 sm:$0xf0]
  %vm101 = vcmask 1047556
  %v102 = vsel %vm101, %v100, %v98
  %103 = vrot.lane.b32.xlu0 %v102, 64
  %v104 = vpop.permute.xlu0 %103
  %vm105 = vcmask 785920
  %s106 = scalar_lea.vmem %s1, 8
  %107 = vst.msk [vmem:[%s106] sm:$0xff] %vm105, %v104
  %s108 = scalar_lea.vmem %s0, 66
  %v109 = vld [vmem:[%s108] ss:$8 sm:$0xf]
  %s110 = scalar_lea.vmem %s0, 66
  %v111 = vld [vmem:[%s110] ss:$8 sm:$0xf0]
  %vm112 = vcmask 1047556
  %v113 = vsel %vm112, %v111, %v109
  %114 = vrot.lane.b32.xlu0 %v113, 64
  %v115 = vpop.permute.xlu0 %114
  %vm116 = vcmask 785920
  %s117 = scalar_lea.vmem %s1, 16
  %118 = vst.msk [vmem:[%s117] sm:$0xff] %vm116, %v115
  %s119 = scalar_lea.vmem %s0, 70
  %v120 = vld [vmem:[%s119] ss:$8 sm:$0xf]
  %s121 = scalar_lea.vmem %s0, 70
  %v122 = vld [vmem:[%s121] ss:$8 sm:$0xf0]
  %vm123 = vcmask 1047556
  %v124 = vsel %vm123, %v122, %v120
  %125 = vrot.lane.b32.xlu0 %v124, 64
  %v126 = vpop.permute.xlu0 %125
  %vm127 = vcmask 785920
  %s128 = scalar_lea.vmem %s1, 24
  %129 = vst.msk [vmem:[%s128] sm:$0xff] %vm127, %v126
  %s130 = scalar_lea.vmem %s0, 1
  %v131 = vld [vmem:[%s130] ss:$8 sm:$0xf]
  %s132 = scalar_lea.vmem %s0, 1
  %v133 = vld [vmem:[%s132] ss:$8 sm:$0xf0]
  %vm134 = vcmask 1047556
  %v135 = vsel %vm134, %v133, %v131
  %136 = vrot.lane.b32.xlu0 %v135, 32
  %v137 = vpop.permute.xlu0 %136
  %vm138 = vcmask 523520
  %139 = vst.msk [vmem:[%s1] sm:$0xff] %vm138, %v137
  %s140 = scalar_lea.vmem %s0, 5
  %v141 = vld [vmem:[%s140] ss:$8 sm:$0xf]
  %s142 = scalar_lea.vmem %s0, 5
  %v143 = vld [vmem:[%s142] ss:$8 sm:$0xf0]
  %vm144 = vcmask 1047556
  %v145 = vsel %vm144, %v143, %v141
  %146 = vrot.lane.b32.xlu0 %v145, 32
  %v147 = vpop.permute.xlu0 %146
  %vm148 = vcmask 523520
  %s149 = scalar_lea.vmem %s1, 8
  %150 = vst.msk [vmem:[%s149] sm:$0xff] %vm148, %v147
  %s151 = scalar_lea.vmem %s0, 65
  %v152 = vld [vmem:[%s151] ss:$8 sm:$0xf]
  %s153 = scalar_lea.vmem %s0, 65
  %v154 = vld [vmem:[%s153] ss:$8 sm:$0xf0]
  %vm155 = vcmask 1047556
  %v156 = vsel %vm155, %v154, %v152
  %157 = vrot.lane.b32.xlu0 %v156, 32
  %v158 = vpop.permute.xlu0 %157
  %vm159 = vcmask 523520
  %s160 = scalar_lea.vmem %s1, 16
  %161 = vst.msk [vmem:[%s160] sm:$0xff] %vm159, %v158
  %s162 = scalar_lea.vmem %s0, 69
  %v163 = vld [vmem:[%s162] ss:$8 sm:$0xf]
  %s164 = scalar_lea.vmem %s0, 69
  %v165 = vld [vmem:[%s164] ss:$8 sm:$0xf0]
  %vm166 = vcmask 1047556
  %v167 = vsel %vm166, %v165, %v163
  %168 = vrot.lane.b32.xlu0 %v167, 32
  %v169 = vpop.permute.xlu0 %168
  %vm170 = vcmask 523520
  %s171 = scalar_lea.vmem %s1, 24
  %172 = vst.msk [vmem:[%s171] sm:$0xff] %vm170, %v169

// kernel: forward.1
$region0: #{forward.1}
  #allocation0 [shape = 'u32[]', space=smem, size = 0x4, offset = 0x4, fixed_abs, tag = 'smem constant byte address 0x4 - core index']
  #allocation1 [shape = 'u32[144,128]{1,0:T(1,128)}', space=vmem, size = 0x12000, scoped, tag = 'internal scratch']
  %s0 = inlined_call_operand.vmem [shape: f32[2,32,16], index: 0, kind: input, shape index: {}]
  %s1 = inlined_call_operand.vmem [shape: f32[2,32,128], index: 1, kind: input, shape index: {}]
  %s2 = inlined_call_operand.vmem [shape: f32[2,32,256], index: 2, kind: input, shape index: {}]
  %s3 = inlined_call_operand.vmem [shape: f32[16,256], index: 3, kind: input, shape index: {}]
  %s4 = inlined_call_operand.vmem [shape: f32[1,256], index: 4, kind: input, shape index: {}]
  %s5 = inlined_call_operand.vmem [shape: f32[128,256], index: 5, kind: input, shape index: {}]
  %s6 = inlined_call_operand.vmem [shape: f32[1,256], index: 6, kind: input, shape index: {}]
  %s7 = inlined_call_operand.vmem [shape: f32[256,256], index: 7, kind: input, shape index: {}]
  %s8 = inlined_call_operand.vmem [shape: f32[256,32], index: 8, kind: input, shape index: {}]
  %s9 = inlined_call_operand.vmem [shape: f32[1,32], index: 9, kind: input, shape index: {}]
  %s10 = inlined_call_operand.vmem [shape: f32[32,128], index: 10, kind: input, shape index: {}]
  %s11 = inlined_call_operand.vmem [shape: f32[32,128], index: 11, kind: input, shape index: {}]
  %s12 = inlined_call_operand.vmem [shape: f32[1,128], index: 12, kind: input, shape index: {}]
  %s13 = inlined_call_operand.vmem [shape: f32[32,128], index: 13, kind: input, shape index: {}]
  %s14 = inlined_call_operand.vmem [shape: f32[1,128], index: 14, kind: input, shape index: {}]
  %s15 = inlined_call_operand.vmem [shape: f32[128,6], index: 15, kind: input, shape index: {}]
  %s16 = inlined_call_operand.vmem [shape: f32[1,6], index: 16, kind: input, shape index: {}]
  %s17 = inlined_call_operand.hbm [shape: f32[2,1,5], index: 17, kind: output, shape index: {0}]
  %s18 = inlined_call_operand.hbm [shape: f32[2,1,32], index: 18, kind: output, shape index: {1}]
  %s19 = inlined_call_operand.hbm [shape: f32[2,1,32], index: 19, kind: output, shape index: {2}]
  %20 = xla_tuple %s17, %s18, %s19
  %s21 = sld [smem:[#allocation0]]
  $region117: #{forward.1} parent=0
    _
  %s23 = ssub.s32 1, %s21
  %s24 = scalar_select 0, %s23, %s21
  $region1: #{forward.1} parent=0
    #allocation2 [shape = 'u8[1024]{0}', space=vmem, size = 0x400, scoped, tag = 'output window, operand 0']
    #allocation3 [shape = 's32[2]{0}', space=sflag, size = 0x8, scoped, tag = 'scoped memory for forward.1']
    #allocation4 [shape = 'u8[1024]{0}', space=vmem, size = 0x400, scoped, tag = 'output window, operand 1']
    #allocation5 [shape = 's32[2]{0}', space=sflag, size = 0x8, scoped, tag = 'scoped memory for forward.1']
    #allocation6 [shape = 'u8[1024]{0}', space=vmem, size = 0x400, scoped, tag = 'output window, operand 2']
    %25 = vsyncpa [#allocation3], 0
    %s26 = scalar_lea.sflag [#allocation3], 1
    %27 = vsyncpa %s26, 0
    %28 = vsyncpa [#allocation5], 0
    %s29 = scalar_lea.sflag [#allocation5], 1
    %30 = vsyncpa %s29, 0
    loop: start=0, step=1, limit=4
    $region2: #{forward.1} parent=1 // loop_pre_header
      _
    $region3: #{forward.1} parent=1 // loop_header
      %s32 = sphi 0, %s36
      %p33 = scmp.ge.s32.totalorder %s32, 4
      %s42 = sphi 0, %s44
      %s45 = sphi 0, %s42
      %s46 = sphi 0, %s45
      %s62 = sphi 0, %s46
      %s68 = sphi 0, %s70
      %s71 = sphi 0, %s68
      %s72 = sphi 0, %s71
      %s88 = sphi 0, %s72
      %s94 = sphi 0, %s96
      %s97 = sphi 0, %s94
      %s98 = sphi 0, %s97
      %s114 = sphi 0, %s98
      %s118 = sphi 0, %s118
      %s120 = sphi 0, %s118
      %s121 = sphi 0, %s120
      %s135 = sphi 0, %s121
      %s139 = sphi 0, %s139
      %s141 = sphi 0, %s139
      %s142 = sphi 0, %s141
      %s156 = sphi 0, %s142
      %s160 = sphi 0, %s160
      %s162 = sphi 0, %s160
      %s163 = sphi 0, %s162
      %s177 = sphi 0, %s163
      %s181 = sphi 0, %s181
      %s183 = sphi 0, %s181
      %s184 = sphi 0, %s183
      %s198 = sphi 0, %s184
      %s202 = sphi 0, %s202
      %s204 = sphi 0, %s202
      %s205 = sphi 0, %s204
      %s219 = sphi 0, %s205
      %s223 = sphi 0, %s223
      %s225 = sphi 0, %s223
      %s226 = sphi 0, %s225
      %s240 = sphi 0, %s226
      %s244 = sphi 0, %s244
      %s246 = sphi 0, %s244
      %s247 = sphi 0, %s246
      %s261 = sphi 0, %s247
      %s265 = sphi 0, %s265
      %s267 = sphi 0, %s265
      %s268 = sphi 0, %s267
      %s282 = sphi 0, %s268
      %s286 = sphi 0, %s286
      %s288 = sphi 0, %s286
      %s289 = sphi 0, %s288
      %s303 = sphi 0, %s289
      %s307 = sphi 0, %s307
      %s309 = sphi 0, %s307
      %s310 = sphi 0, %s309
      %s324 = sphi 0, %s310
      %s328 = sphi 0, %s328
      %s330 = sphi 0, %s328
      %s331 = sphi 0, %s330
      %s345 = sphi 0, %s331
      %s349 = sphi 0, %s349
      %s351 = sphi 0, %s349
      %s352 = sphi 0, %s351
      %s366 = sphi 0, %s352
      %s370 = sphi 0, %s370
      %s372 = sphi 0, %s370
      %s373 = sphi 0, %s372
      %s387 = sphi 0, %s373
      %s391 = sphi 0, %s391
      %s393 = sphi 0, %s391
      %s394 = sphi 0, %s393
      %s408 = sphi 0, %s394
      %s414 = sphi 0, %s416
      %s417 = sphi 0, %s414
      %s418 = sphi 0, %s417
      %s434 = sphi 0, %s418
      %s440 = sphi 0, %s442
      %s443 = sphi 0, %s440
      %s444 = sphi 0, %s443
      %s460 = sphi 0, %s444
      %s466 = sphi 0, %s468
      %s469 = sphi 0, %s466
      %s470 = sphi 0, %s469
      %s486 = sphi 0, %s470
    $region4: #{forward.1} parent=1 // loop_header_branch
      %35 = sbr.rel (%p33) target = $region8
    $region5: #{forward.1} parent=1 // loop_body
      %s37 = ssub.s32 %s32, 1
      %s38 = ssub.s32 %s32, 2
      %s39 = sadd.s32 %s32, 1
      %s40 = ssub.s32 %s32, %s39
      %p41 = scmp.eq.s32.totalorder %s40, 0
      %s43 = sadd.s32 %s42, 1
      %s44 = scalar_select %p41, %s42, %s43
      %p47 = pneg %p41
      %p48 = scmp.eq.s32.totalorder %s32, 1
      %p49 = por %p47, %p48
      %p50 = scmp.ne.s32.totalorder %s42, %s45
      %p51 = scmp.eq.s32.totalorder %s32, 0
      %p52 = por %p50, %p51
      %p53 = scmp.ne.s32.totalorder %s42, %s45
      %p54 = scmp.eq.s32.totalorder %s37, 1
      %p55 = por %p53, %p54
      %p56 = scmp.ne.s32.totalorder %s45, %s46
      %p57 = scmp.eq.s32.totalorder %s37, 0
      %p58 = por %p56, %p57
      %p59 = scmp.ne.s32.totalorder %s45, %s46
      %p60 = scmp.eq.s32.totalorder %s38, 1
      %p61 = por %p59, %p60
      %p63 = scmp.ne.s32.totalorder %s46, %s62
      %p64 = scmp.eq.s32.totalorder %s38, 0
      %p65 = por %p63, %p64
      %s66 = ssub.s32 %s32, %s39
      %p67 = scmp.eq.s32.totalorder %s66, 0
      %s69 = sadd.s32 %s68, 1
      %s70 = scalar_select %p67, %s68, %s69
      %p73 = pneg %p67
      %p74 = scmp.eq.s32.totalorder %s32, 1
      %p75 = por %p73, %p74
      %p76 = scmp.ne.s32.totalorder %s68, %s71
      %p77 = scmp.eq.s32.totalorder %s32, 0
      %p78 = por %p76, %p77
      %p79 = scmp.ne.s32.totalorder %s68, %s71
      %p80 = scmp.eq.s32.totalorder %s37, 1
      %p81 = por %p79, %p80
      %p82 = scmp.ne.s32.totalorder %s71, %s72
      %p83 = scmp.eq.s32.totalorder %s37, 0
      %p84 = por %p82, %p83
      %p85 = scmp.ne.s32.totalorder %s71, %s72
      %p86 = scmp.eq.s32.totalorder %s38, 1
      %p87 = por %p85, %p86
      %p89 = scmp.ne.s32.totalorder %s72, %s88
      %p90 = scmp.eq.s32.totalorder %s38, 0
      %p91 = por %p89, %p90
      %s92 = ssub.s32 %s32, %s39
      %p93 = scmp.eq.s32.totalorder %s92, 0
      %s95 = sadd.s32 %s94, 1
      %s96 = scalar_select %p93, %s94, %s95
      %p99 = pneg %p93
      %p100 = scmp.eq.s32.totalorder %s32, 1
      %p101 = por %p99, %p100
      %p102 = scmp.ne.s32.totalorder %s94, %s97
      %p103 = scmp.eq.s32.totalorder %s32, 0
      %p104 = por %p102, %p103
      %p105 = scmp.ne.s32.totalorder %s94, %s97
      %p106 = scmp.eq.s32.totalorder %s37, 1
      %p107 = por %p105, %p106
      %p108 = scmp.ne.s32.totalorder %s97, %s98
      %p109 = scmp.eq.s32.totalorder %s37, 0
      %p110 = por %p108, %p109
      %p111 = scmp.ne.s32.totalorder %s97, %s98
      %p112 = scmp.eq.s32.totalorder %s38, 1
      %p113 = por %p111, %p112
      %p115 = scmp.ne.s32.totalorder %s98, %s114
      %p116 = scmp.eq.s32.totalorder %s38, 0
      %p117 = por %p115, %p116
      %s119 = sadd.s32 %s118, 1
      %p122 = scmp.eq.s32.totalorder %s32, 1
      %p123 = scmp.ne.s32.totalorder %s118, %s120
      %p124 = scmp.eq.s32.totalorder %s32, 0
      %p125 = por %p123, %p124
      %p126 = scmp.ne.s32.totalorder %s118, %s120
      %p127 = scmp.eq.s32.totalorder %s37, 1
      %p128 = por %p126, %p127
      %p129 = scmp.ne.s32.totalorder %s120, %s121
      %p130 = scmp.eq.s32.totalorder %s37, 0
      %p131 = por %p129, %p130
      %p132 = scmp.ne.s32.totalorder %s120, %s121
      %p133 = scmp.eq.s32.totalorder %s38, 1
      %p134 = por %p132, %p133
      %p136 = scmp.ne.s32.totalorder %s121, %s135
      %p137 = scmp.eq.s32.totalorder %s38, 0
      %p138 = por %p136, %p137
      %s140 = sadd.s32 %s139, 1
      %p143 = scmp.eq.s32.totalorder %s32, 1
      %p144 = scmp.ne.s32.totalorder %s139, %s141
      %p145 = scmp.eq.s32.totalorder %s32, 0
      %p146 = por %p144, %p145
      %p147 = scmp.ne.s32.totalorder %s139, %s141
      %p148 = scmp.eq.s32.totalorder %s37, 1
      %p149 = por %p147, %p148
      %p150 = scmp.ne.s32.totalorder %s141, %s142
      %p151 = scmp.eq.s32.totalorder %s37, 0
      %p152 = por %p150, %p151
      %p153 = scmp.ne.s32.totalorder %s141, %s142
      %p154 = scmp.eq.s32.totalorder %s38, 1
      %p155 = por %p153, %p154
      %p157 = scmp.ne.s32.totalorder %s142, %s156
      %p158 = scmp.eq.s32.totalorder %s38, 0
      %p159 = por %p157, %p158
      %s161 = sadd.s32 %s160, 1
      %p164 = scmp.eq.s32.totalorder %s32, 1
      %p165 = scmp.ne.s32.totalorder %s160, %s162
      %p166 = scmp.eq.s32.totalorder %s32, 0
      %p167 = por %p165, %p166
      %p168 = scmp.ne.s32.totalorder %s160, %s162
      %p169 = scmp.eq.s32.totalorder %s37, 1
      %p170 = por %p168, %p169
      %p171 = scmp.ne.s32.totalorder %s162, %s163
      %p172 = scmp.eq.s32.totalorder %s37, 0
      %p173 = por %p171, %p172
      %p174 = scmp.ne.s32.totalorder %s162, %s163
      %p175 = scmp.eq.s32.totalorder %s38, 1
      %p176 = por %p174, %p175
      %p178 = scmp.ne.s32.totalorder %s163, %s177
      %p179 = scmp.eq.s32.totalorder %s38, 0
      %p180 = por %p178, %p179
      %s182 = sadd.s32 %s181, 1
      %p185 = scmp.eq.s32.totalorder %s32, 1
      %p186 = scmp.ne.s32.totalorder %s181, %s183
      %p187 = scmp.eq.s32.totalorder %s32, 0
      %p188 = por %p186, %p187
      %p189 = scmp.ne.s32.totalorder %s181, %s183
      %p190 = scmp.eq.s32.totalorder %s37, 1
      %p191 = por %p189, %p190
      %p192 = scmp.ne.s32.totalorder %s183, %s184
      %p193 = scmp.eq.s32.totalorder %s37, 0
      %p194 = por %p192, %p193
      %p195 = scmp.ne.s32.totalorder %s183, %s184
      %p196 = scmp.eq.s32.totalorder %s38, 1
      %p197 = por %p195, %p196
      %p199 = scmp.ne.s32.totalorder %s184, %s198
      %p200 = scmp.eq.s32.totalorder %s38, 0
      %p201 = por %p199, %p200
      %s203 = sadd.s32 %s202, 1
      %p206 = scmp.eq.s32.totalorder %s32, 1
      %p207 = scmp.ne.s32.totalorder %s202, %s204
      %p208 = scmp.eq.s32.totalorder %s32, 0
      %p209 = por %p207, %p208
      %p210 = scmp.ne.s32.totalorder %s202, %s204
      %p211 = scmp.eq.s32.totalorder %s37, 1
      %p212 = por %p210, %p211
      %p213 = scmp.ne.s32.totalorder %s204, %s205
      %p214 = scmp.eq.s32.totalorder %s37, 0
      %p215 = por %p213, %p214
      %p216 = scmp.ne.s32.totalorder %s204, %s205
      %p217 = scmp.eq.s32.totalorder %s38, 1
      %p218 = por %p216, %p217
      %p220 = scmp.ne.s32.totalorder %s205, %s219
      %p221 = scmp.eq.s32.totalorder %s38, 0
      %p222 = por %p220, %p221
      %s224 = sadd.s32 %s223, 1
      %p227 = scmp.eq.s32.totalorder %s32, 1
      %p228 = scmp.ne.s32.totalorder %s223, %s225
      %p229 = scmp.eq.s32.totalorder %s32, 0
      %p230 = por %p228, %p229
      %p231 = scmp.ne.s32.totalorder %s223, %s225
      %p232 = scmp.eq.s32.totalorder %s37, 1
      %p233 = por %p231, %p232
      %p234 = scmp.ne.s32.totalorder %s225, %s226
      %p235 = scmp.eq.s32.totalorder %s37, 0
      %p236 = por %p234, %p235
      %p237 = scmp.ne.s32.totalorder %s225, %s226
      %p238 = scmp.eq.s32.totalorder %s38, 1
      %p239 = por %p237, %p238
      %p241 = scmp.ne.s32.totalorder %s226, %s240
      %p242 = scmp.eq.s32.totalorder %s38, 0
      %p243 = por %p241, %p242
      %s245 = sadd.s32 %s244, 1
      %p248 = scmp.eq.s32.totalorder %s32, 1
      %p249 = scmp.ne.s32.totalorder %s244, %s246
      %p250 = scmp.eq.s32.totalorder %s32, 0
      %p251 = por %p249, %p250
      %p252 = scmp.ne.s32.totalorder %s244, %s246
      %p253 = scmp.eq.s32.totalorder %s37, 1
      %p254 = por %p252, %p253
      %p255 = scmp.ne.s32.totalorder %s246, %s247
      %p256 = scmp.eq.s32.totalorder %s37, 0
      %p257 = por %p255, %p256
      %p258 = scmp.ne.s32.totalorder %s246, %s247
      %p259 = scmp.eq.s32.totalorder %s38, 1
      %p260 = por %p258, %p259
      %p262 = scmp.ne.s32.totalorder %s247, %s261
      %p263 = scmp.eq.s32.totalorder %s38, 0
      %p264 = por %p262, %p263
      %s266 = sadd.s32 %s265, 1
      %p269 = scmp.eq.s32.totalorder %s32, 1
      %p270 = scmp.ne.s32.totalorder %s265, %s267
      %p271 = scmp.eq.s32.totalorder %s32, 0
      %p272 = por %p270, %p271
      %p273 = scmp.ne.s32.totalorder %s265, %s267
      %p274 = scmp.eq.s32.totalorder %s37, 1
      %p275 = por %p273, %p274
      %p276 = scmp.ne.s32.totalorder %s267, %s268
      %p277 = scmp.eq.s32.totalorder %s37, 0
      %p278 = por %p276, %p277
      %p279 = scmp.ne.s32.totalorder %s267, %s268
      %p280 = scmp.eq.s32.totalorder %s38, 1
      %p281 = por %p279, %p280
      %p283 = scmp.ne.s32.totalorder %s268, %s282
      %p284 = scmp.eq.s32.totalorder %s38, 0
      %p285 = por %p283, %p284
      %s287 = sadd.s32 %s286, 1
      %p290 = scmp.eq.s32.totalorder %s32, 1
      %p291 = scmp.ne.s32.totalorder %s286, %s288
      %p292 = scmp.eq.s32.totalorder %s32, 0
      %p293 = por %p291, %p292
      %p294 = scmp.ne.s32.totalorder %s286, %s288
      %p295 = scmp.eq.s32.totalorder %s37, 1
      %p296 = por %p294, %p295
      %p297 = scmp.ne.s32.totalorder %s288, %s289
      %p298 = scmp.eq.s32.totalorder %s37, 0
      %p299 = por %p297, %p298
      %p300 = scmp.ne.s32.totalorder %s288, %s289
      %p301 = scmp.eq.s32.totalorder %s38, 1
      %p302 = por %p300, %p301
      %p304 = scmp.ne.s32.totalorder %s289, %s303
      %p305 = scmp.eq.s32.totalorder %s38, 0
      %p306 = por %p304, %p305
      %s308 = sadd.s32 %s307, 1
      %p311 = scmp.eq.s32.totalorder %s32, 1
      %p312 = scmp.ne.s32.totalorder %s307, %s309
      %p313 = scmp.eq.s32.totalorder %s32, 0
      %p314 = por %p312, %p313
      %p315 = scmp.ne.s32.totalorder %s307, %s309
      %p316 = scmp.eq.s32.totalorder %s37, 1
      %p317 = por %p315, %p316
      %p318 = scmp.ne.s32.totalorder %s309, %s310
      %p319 = scmp.eq.s32.totalorder %s37, 0
      %p320 = por %p318, %p319
      %p321 = scmp.ne.s32.totalorder %s309, %s310
      %p322 = scmp.eq.s32.totalorder %s38, 1
      %p323 = por %p321, %p322
      %p325 = scmp.ne.s32.totalorder %s310, %s324
      %p326 = scmp.eq.s32.totalorder %s38, 0
      %p327 = por %p325, %p326
      %s329 = sadd.s32 %s328, 1
      %p332 = scmp.eq.s32.totalorder %s32, 1
      %p333 = scmp.ne.s32.totalorder %s328, %s330
      %p334 = scmp.eq.s32.totalorder %s32, 0
      %p335 = por %p333, %p334
      %p336 = scmp.ne.s32.totalorder %s328, %s330
      %p337 = scmp.eq.s32.totalorder %s37, 1
      %p338 = por %p336, %p337
      %p339 = scmp.ne.s32.totalorder %s330, %s331
      %p340 = scmp.eq.s32.totalorder %s37, 0
      %p341 = por %p339, %p340
      %p342 = scmp.ne.s32.totalorder %s330, %s331
      %p343 = scmp.eq.s32.totalorder %s38, 1
      %p344 = por %p342, %p343
      %p346 = scmp.ne.s32.totalorder %s331, %s345
      %p347 = scmp.eq.s32.totalorder %s38, 0
      %p348 = por %p346, %p347
      %s350 = sadd.s32 %s349, 1
      %p353 = scmp.eq.s32.totalorder %s32, 1
      %p354 = scmp.ne.s32.totalorder %s349, %s351
      %p355 = scmp.eq.s32.totalorder %s32, 0
      %p356 = por %p354, %p355
      %p357 = scmp.ne.s32.totalorder %s349, %s351
      %p358 = scmp.eq.s32.totalorder %s37, 1
      %p359 = por %p357, %p358
      %p360 = scmp.ne.s32.totalorder %s351, %s352
      %p361 = scmp.eq.s32.totalorder %s37, 0
      %p362 = por %p360, %p361
      %p363 = scmp.ne.s32.totalorder %s351, %s352
      %p364 = scmp.eq.s32.totalorder %s38, 1
      %p365 = por %p363, %p364
      %p367 = scmp.ne.s32.totalorder %s352, %s366
      %p368 = scmp.eq.s32.totalorder %s38, 0
      %p369 = por %p367, %p368
      %s371 = sadd.s32 %s370, 1
      %p374 = scmp.eq.s32.totalorder %s32, 1
      %p375 = scmp.ne.s32.totalorder %s370, %s372
      %p376 = scmp.eq.s32.totalorder %s32, 0
      %p377 = por %p375, %p376
      %p378 = scmp.ne.s32.totalorder %s370, %s372
      %p379 = scmp.eq.s32.totalorder %s37, 1
      %p380 = por %p378, %p379
      %p381 = scmp.ne.s32.totalorder %s372, %s373
      %p382 = scmp.eq.s32.totalorder %s37, 0
      %p383 = por %p381, %p382
      %p384 = scmp.ne.s32.totalorder %s372, %s373
      %p385 = scmp.eq.s32.totalorder %s38, 1
      %p386 = por %p384, %p385
      %p388 = scmp.ne.s32.totalorder %s373, %s387
      %p389 = scmp.eq.s32.totalorder %s38, 0
      %p390 = por %p388, %p389
      %s392 = sadd.s32 %s391, 1
      %p395 = scmp.eq.s32.totalorder %s32, 1
      %p396 = scmp.ne.s32.totalorder %s391, %s393
      %p397 = scmp.eq.s32.totalorder %s32, 0
      %p398 = por %p396, %p397
      %p399 = scmp.ne.s32.totalorder %s391, %s393
      %p400 = scmp.eq.s32.totalorder %s37, 1
      %p401 = por %p399, %p400
      %p402 = scmp.ne.s32.totalorder %s393, %s394
      %p403 = scmp.eq.s32.totalorder %s37, 0
      %p404 = por %p402, %p403
      %p405 = scmp.ne.s32.totalorder %s393, %s394
      %p406 = scmp.eq.s32.totalorder %s38, 1
      %p407 = por %p405, %p406
      %p409 = scmp.ne.s32.totalorder %s394, %s408
      %p410 = scmp.eq.s32.totalorder %s38, 0
      %p411 = por %p409, %p410
      %s412 = ssub.s32 %s32, %s39
      %p413 = scmp.eq.s32.totalorder %s412, 0
      %s415 = sadd.s32 %s414, 1
      %s416 = scalar_select %p413, %s414, %s415
      %p419 = pneg %p413
      %p420 = scmp.eq.s32.totalorder %s32, 1
      %p421 = por %p419, %p420
      %p422 = scmp.ne.s32.totalorder %s414, %s417
      %p423 = scmp.eq.s32.totalorder %s32, 0
      %p424 = por %p422, %p423
      %p425 = scmp.ne.s32.totalorder %s414, %s417
      %p426 = scmp.eq.s32.totalorder %s37, 1
      %p427 = por %p425, %p426
      %p428 = scmp.ne.s32.totalorder %s417, %s418
      %p429 = scmp.eq.s32.totalorder %s37, 0
      %p430 = por %p428, %p429
      %p431 = scmp.ne.s32.totalorder %s417, %s418
      %p432 = scmp.eq.s32.totalorder %s38, 1
      %p433 = por %p431, %p432
      %p435 = scmp.ne.s32.totalorder %s418, %s434
      %p436 = scmp.eq.s32.totalorder %s38, 0
      %p437 = por %p435, %p436
      %s438 = ssub.s32 %s32, %s39
      %p439 = scmp.eq.s32.totalorder %s438, 0
      %s441 = sadd.s32 %s440, 1
      %s442 = scalar_select %p439, %s440, %s441
      %p445 = pneg %p439
      %p446 = scmp.eq.s32.totalorder %s32, 1
      %p447 = por %p445, %p446
      %p448 = scmp.ne.s32.totalorder %s440, %s443
      %p449 = scmp.eq.s32.totalorder %s32, 0
      %p450 = por %p448, %p449
      %p451 = scmp.ne.s32.totalorder %s440, %s443
      %p452 = scmp.eq.s32.totalorder %s37, 1
      %p453 = por %p451, %p452
      %p454 = scmp.ne.s32.totalorder %s443, %s444
      %p455 = scmp.eq.s32.totalorder %s37, 0
      %p456 = por %p454, %p455
      %p457 = scmp.ne.s32.totalorder %s443, %s444
      %p458 = scmp.eq.s32.totalorder %s38, 1
      %p459 = por %p457, %p458
      %p461 = scmp.ne.s32.totalorder %s444, %s460
      %p462 = scmp.eq.s32.totalorder %s38, 0
      %p463 = por %p461, %p462
      %s464 = ssub.s32 %s32, %s39
      %p465 = scmp.eq.s32.totalorder %s464, 0
      %s467 = sadd.s32 %s466, 1
      %s468 = scalar_select %p465, %s466, %s467
      %p471 = pneg %p465
      %p472 = scmp.eq.s32.totalorder %s32, 1
      %p473 = por %p471, %p472
      %p474 = scmp.ne.s32.totalorder %s466, %s469
      %p475 = scmp.eq.s32.totalorder %s32, 0
      %p476 = por %p474, %p475
      %p477 = scmp.ne.s32.totalorder %s466, %s469
      %p478 = scmp.eq.s32.totalorder %s37, 1
      %p479 = por %p477, %p478
      %p480 = scmp.ne.s32.totalorder %s469, %s470
      %p481 = scmp.eq.s32.totalorder %s37, 0
      %p482 = por %p480, %p481
      %p483 = scmp.ne.s32.totalorder %s469, %s470
      %p484 = scmp.eq.s32.totalorder %s38, 1
      %p485 = por %p483, %p484
      %p487 = scmp.ne.s32.totalorder %s470, %s486
      %p488 = scmp.eq.s32.totalorder %s38, 0
      %p489 = por %p487, %p488
      %p490 = scmp.le.s32.totalorder 1, %s32
      %p491 = scmp.lt.s32.totalorder %s32, 3
      %p492 = pnand %p490, %p491
      %p493 = pneg %p492
      // Predicated region
      $region9: #{forward.1} parent=5 // pred_check
        _
      $region10: #{forward.1} parent=5 // pred_check_branch
        %495 = sbr.rel (%p492) target = $region12
      $region11: #{forward.1} parent=5 // pred_region
        %s496 = ssub.s32 %s32, 1
        // Predicated region
        $region13: #{forward.1} parent=11 // pred_check
          %p497 = pneg %p131
        $region14: #{forward.1} parent=11 // pred_check_branch
          %499 = sbr.rel (%p497) target = $region16
        $region15: #{forward.1} parent=11 // pred_region
          _
        $region16: #{forward.1} parent=11 // pred_fallthru
          _
        // Predicated region
        $region17: #{forward.1} parent=11 // pred_check
          %p500 = pneg %p152
        $region18: #{forward.1} parent=11 // pred_check_branch
          %502 = sbr.rel (%p500) target = $region20
        $region19: #{forward.1} parent=11 // pred_region
          _
        $region20: #{forward.1} parent=11 // pred_fallthru
          _
        // Predicated region
        $region21: #{forward.1} parent=11 // pred_check
          %p503 = pneg %p173
        $region22: #{forward.1} parent=11 // pred_check_branch
          %505 = sbr.rel (%p503) target = $region24
        $region23: #{forward.1} parent=11 // pred_region
          _
        $region24: #{forward.1} parent=11 // pred_fallthru
          _
        // Predicated region
        $region25: #{forward.1} parent=11 // pred_check
          %p506 = pneg %p194
        $region26: #{forward.1} parent=11 // pred_check_branch
          %508 = sbr.rel (%p506) target = $region28
        $region27: #{forward.1} parent=11 // pred_region
          _
        $region28: #{forward.1} parent=11 // pred_fallthru
          _
        // Predicated region
        $region29: #{forward.1} parent=11 // pred_check
          %p509 = pneg %p215
        $region30: #{forward.1} parent=11 // pred_check_branch
          %511 = sbr.rel (%p509) target = $region32
        $region31: #{forward.1} parent=11 // pred_region
          _
        $region32: #{forward.1} parent=11 // pred_fallthru
          _
        // Predicated region
        $region33: #{forward.1} parent=11 // pred_check
          %p512 = pneg %p236
        $region34: #{forward.1} parent=11 // pred_check_branch
          %514 = sbr.rel (%p512) target = $region36
        $region35: #{forward.1} parent=11 // pred_region
          _
        $region36: #{forward.1} parent=11 // pred_fallthru
          _
        // Predicated region
        $region37: #{forward.1} parent=11 // pred_check
          %p515 = pneg %p257
        $region38: #{forward.1} parent=11 // pred_check_branch
          %517 = sbr.rel (%p515) target = $region40
        $region39: #{forward.1} parent=11 // pred_region
          _
        $region40: #{forward.1} parent=11 // pred_fallthru
          _
        // Predicated region
        $region41: #{forward.1} parent=11 // pred_check
          %p518 = pneg %p278
        $region42: #{forward.1} parent=11 // pred_check_branch
          %520 = sbr.rel (%p518) target = $region44
        $region43: #{forward.1} parent=11 // pred_region
          _
        $region44: #{forward.1} parent=11 // pred_fallthru
          _
        // Predicated region
        $region45: #{forward.1} parent=11 // pred_check
          %p521 = pneg %p299
        $region46: #{forward.1} parent=11 // pred_check_branch
          %523 = sbr.rel (%p521) target = $region48
        $region47: #{forward.1} parent=11 // pred_region
          _
        $region48: #{forward.1} parent=11 // pred_fallthru
          _
        // Predicated region
        $region49: #{forward.1} parent=11 // pred_check
          %p524 = pneg %p320
        $region50: #{forward.1} parent=11 // pred_check_branch
          %526 = sbr.rel (%p524) target = $region52
        $region51: #{forward.1} parent=11 // pred_region
          _
        $region52: #{forward.1} parent=11 // pred_fallthru
          _
        // Predicated region
        $region53: #{forward.1} parent=11 // pred_check
          %p527 = pneg %p341
        $region54: #{forward.1} parent=11 // pred_check_branch
          %529 = sbr.rel (%p527) target = $region56
        $region55: #{forward.1} parent=11 // pred_region
          _
        $region56: #{forward.1} parent=11 // pred_fallthru
          _
        // Predicated region
        $region57: #{forward.1} parent=11 // pred_check
          %p530 = pneg %p362
        $region58: #{forward.1} parent=11 // pred_check_branch
          %532 = sbr.rel (%p530) target = $region60
        $region59: #{forward.1} parent=11 // pred_region
          _
        $region60: #{forward.1} parent=11 // pred_fallthru
          _
        // Predicated region
        $region61: #{forward.1} parent=11 // pred_check
          %p533 = pneg %p383
        $region62: #{forward.1} parent=11 // pred_check_branch
          %535 = sbr.rel (%p533) target = $region64
        $region63: #{forward.1} parent=11 // pred_region
          _
        $region64: #{forward.1} parent=11 // pred_fallthru
          _
        // Predicated region
        $region65: #{forward.1} parent=11 // pred_check
          %p536 = pneg %p404
        $region66: #{forward.1} parent=11 // pred_check_branch
          %538 = sbr.rel (%p536) target = $region68
        $region67: #{forward.1} parent=11 // pred_region
          _
        $region68: #{forward.1} parent=11 // pred_fallthru
          _
      $region12: #{forward.1} parent=5 // pred_fallthru
        _
      %p539 = scmp.lt.s32.totalorder %s32, 2
      // Predicated region
      $region69: #{forward.1} parent=5 // pred_check
        %p540 = pneg %p539
      $region70: #{forward.1} parent=5 // pred_check_branch
        %542 = sbr.rel (%p540) target = $region72
      $region71: #{forward.1} parent=5 // pred_region
        // Predicated region
        $region73: #{forward.1} parent=71 // pred_check
          %p543 = pneg %p52
        $region74: #{forward.1} parent=71 // pred_check_branch
          %545 = sbr.rel (%p543) target = $region76
        $region75: #{forward.1} parent=71 // pred_region
          %p546 = scmp.lt.s32.totalorder %s32, 1
          %s547 = scalar_select %p546, %s32, 1
          %s548 = smul.addr %s547, 4
          %s549 = smul.addr %s548, 8
          %s550 = scalar_lea.vmem %s0, %s549
        $region76: #{forward.1} parent=71 // pred_fallthru
          _
        // Predicated region
        $region77: #{forward.1} parent=71 // pred_check
          %p551 = pneg %p78
        $region78: #{forward.1} parent=71 // pred_check_branch
          %553 = sbr.rel (%p551) target = $region80
        $region79: #{forward.1} parent=71 // pred_region
          %p554 = scmp.lt.s32.totalorder %s32, 1
          %s555 = scalar_select %p554, %s32, 1
          %s556 = smul.addr %s555, 4
          %s557 = smul.addr %s556, 8
          %s558 = scalar_lea.vmem %s1, %s557
        $region80: #{forward.1} parent=71 // pred_fallthru
          _
        // Predicated region
        $region81: #{forward.1} parent=71 // pred_check
          %p559 = pneg %p104
        $region82: #{forward.1} parent=71 // pred_check_branch
          %561 = sbr.rel (%p559) target = $region84
        $region83: #{forward.1} parent=71 // pred_region
          %p562 = scmp.lt.s32.totalorder %s32, 1
          %s563 = scalar_select %p562, %s32, 1
          %s564 = smul.addr %s563, 8
          %s565 = smul.addr %s564, 8
          %s566 = scalar_lea.vmem %s2, %s565
        $region84: #{forward.1} parent=71 // pred_fallthru
          _
      $region72: #{forward.1} parent=5 // pred_fallthru
        _
      %p567 = scmp.le.s32.totalorder 1, %s32
      %p568 = scmp.lt.s32.totalorder %s32, 3
      %p569 = pnand %p567, %p568
      %p570 = pneg %p569
      // Predicated region
      $region85: #{forward.1} parent=5 // pred_check
        _
      $region86: #{forward.1} parent=5 // pred_check_branch
        %572 = sbr.rel (%p569) target = $region88
      $region87: #{forward.1} parent=5 // pred_region
        %s573 = ssub.s32 %s32, 1
        %p574 = scmp.lt.s32.totalorder %s37, 1
        %s575 = scalar_select %p574, %s37, 1
        %s576 = smul.addr %s575, 4
        %s577 = smul.addr %s576, 8
        %s578 = scalar_lea.vmem %s0, %s577
        %p579 = pneg %p58
        %p580 = pneg %p55
        %p581 = scmp.lt.s32.totalorder %s37, 1
        %s582 = scalar_select %p581, %s37, 1
        %s583 = smul.addr %s582, 4
        %s584 = smul.addr %s583, 8
        %s585 = scalar_lea.vmem %s1, %s584
        %p586 = pneg %p84
        %p587 = pneg %p81
        %p588 = scmp.lt.s32.totalorder %s37, 1
        %s589 = scalar_select %p588, %s37, 1
        %s590 = smul.addr %s589, 8
        %s591 = smul.addr %s590, 8
        %s592 = scalar_lea.vmem %s2, %s591
        %p593 = pneg %p110
        %p594 = pneg %p107
        %p595 = pneg %p131
        %p596 = pneg %p128
        %p597 = pneg %p152
        %p598 = pneg %p149
        %p599 = pneg %p173
        %p600 = pneg %p170
        %p601 = pneg %p194
        %p602 = pneg %p191
        %p603 = pneg %p215
        %p604 = pneg %p212
        %p605 = pneg %p236
        %p606 = pneg %p233
        %p607 = pneg %p257
        %p608 = pneg %p254
        %p609 = pneg %p278
        %p610 = pneg %p275
        %p611 = pneg %p299
        %p612 = pneg %p296
        %p613 = pneg %p320
        %p614 = pneg %p317
        %p615 = pneg %p341
        %p616 = pneg %p338
        %p617 = pneg %p362
        %p618 = pneg %p359
        %p619 = pneg %p383
        %p620 = pneg %p380
        %p621 = pneg %p404
        %p622 = pneg %p401
        %p623 = pneg %p430
        %p624 = pneg %p427
        %s625 = sand.u32 %s417, 1
        %s626 = scalar_lea.sflag [#allocation3], %s625
        %s627 = sand.u32 %s417, 1
        %s628 = scalar_lea.vmem [#allocation2], %s627
        %p629 = pneg %p456
        %p630 = pneg %p453
        %s631 = sand.u32 %s37, 1
        %s632 = scalar_lea.sflag [#allocation5], %s631
        %s633 = sand.u32 %s443, 1
        %s634 = scalar_lea.vmem [#allocation4], %s633
        %p635 = pneg %p482
        %p636 = pneg %p479
        %s637 = sand.u32 %s37, 1
        %s638 = scalar_lea.sflag [#allocation5], %s637
        %s639 = sand.u32 %s469, 1
        %s640 = scalar_lea.vmem [#allocation6], %s639
        %p641 = scmp.lt.s32.totalorder %s37, 1
        %s642 = scalar_select %p641, %s37, 1
        %s643 = smul.addr %s642, 4
        %s644 = smul.addr %s643, 8
        %s645 = scalar_lea.vmem %s0, %s644
        %p646 = scmp.lt.s32.totalorder %s37, 1
        %s647 = scalar_select %p646, %s37, 1
        %s648 = smul.addr %s647, 4
        %s649 = smul.addr %s648, 8
        %s650 = scalar_lea.vmem %s1, %s649
        %p651 = scmp.lt.s32.totalorder %s37, 1
        %s652 = scalar_select %p651, %s37, 1
        %s653 = smul.addr %s652, 8
        %s654 = smul.addr %s653, 8
        %s655 = scalar_lea.vmem %s2, %s654
        %v656 = vld [vmem:[%s645] sm:$0xff]
        %v657 = vld [vmem:[%s645 + $0x8] sm:$0xff]
        %v658 = vld [vmem:[%s645 + $0x10] sm:$0xff]
        %v659 = vld [vmem:[%s645 + $0x18] sm:$0xff]
        %v660 = vld [vmem:[%s3] sm:$0xff]
        %v661 = vld [vmem:[%s3 + $0x8] sm:$0xff]
        %v662 = vld [vmem:[%s3 + $0x10] sm:$0xff]
        %v663 = vld [vmem:[%s3 + $0x18] sm:$0xff]
        %v664 = vld [vmem:[%s4] sm:$0x3]
        %v666 = vlaneseq
        %v667 = vshrl.u32 %v666, 7
        %v668 = vsub.s32 0, %v667
        %v669 = vrot.slane %v664, %v668
        %v670 = vlaneseq
        %v671 = vshrl.u32 %v670, 7
        %v672 = vsub.s32 1, %v671
        %v673 = vrot.slane %v664, %v672
        %vm676 = vcmask 130048
        %v678 = vsel %vm676, %v656, 0
        %v681 = vsel %vm676, %v657, 0
        %v684 = vsel %vm676, %v658, 0
        %v687 = vsel %vm676, %v659, 0
        %689 = vmatprep.subr.mxu0 %v661
        %690 = vmatpush1.msra.mxu0 %v660
        %691 = vmatprep.subr.mxu0 %v663
        %692 = vmatpush1.msra.mxu0 %v662
        %693 = vmatprep.subr.mxu0 0.0
        %694 = vmatpush1.msra.mxu0 0.0
        %695 = vmatprep.subr.mxu0 0.0
        %696 = vmatpush1.msra.mxu0 0.0
        %697 = vmatprep.subr.mxu0 0.0
        %698 = vmatpush1.msra.mxu0 0.0
        %699 = vmatprep.subr.mxu0 0.0
        %700 = vmatpush1.msra.mxu0 0.0
        %701 = vmatprep.subr.mxu0 0.0
        %702 = vmatpush1.msra.mxu0 0.0
        %703 = vmatprep.subr.mxu0 0.0
        %704 = vmatpush1.msra.mxu0 0.0
        %705 = vmatprep.subr.mxu0 0.0
        %706 = vmatpush1.msra.mxu0 0.0
        %707 = vmatprep.subr.mxu0 0.0
        %708 = vmatpush1.msra.mxu0 0.0
        %709 = vmatprep.subr.mxu0 0.0
        %710 = vmatpush1.msra.mxu0 0.0
        %711 = vmatprep.subr.mxu0 0.0
        %712 = vmatpush1.msra.mxu0 0.0
        %713 = vmatprep.subr.mxu0 0.0
        %714 = vmatpush1.msra.mxu0 0.0
        %715 = vmatprep.subr.mxu0 0.0
        %716 = vmatpush1.msra.mxu0 0.0
        %717 = vmatprep.subr.mxu0 0.0
        %718 = vmatpush1.msra.mxu0 0.0
        %719 = vmatprep.subr.mxu0 0.0
        %720 = vmatpush1.msra.mxu0 0.0
        %721 = vmatprep.subr.mxu0 0.0
        %722 = vmatpush1.msra.mxu0 0.0
        %723 = vmatprep.subr.mxu0 0.0
        %724 = vmatpush1.msra.mxu0 0.0
        %725 = vmatprep.subr.mxu0 0.0
        %726 = vmatpush1.msra.mxu0 0.0
        %727 = vmatprep.subr.mxu0 0.0
        %728 = vmatpush1.msra.mxu0 0.0
        %729 = vmatprep.subr.mxu0 0.0
        %730 = vmatpush1.msra.mxu0 0.0
        %731 = vmatprep.subr.mxu0 0.0
        %732 = vmatpush1.msra.mxu0 0.0
        %733 = vmatprep.subr.mxu0 0.0
        %734 = vmatpush1.msra.mxu0 0.0
        %735 = vmatprep.subr.mxu0 0.0
        %736 = vmatpush1.msra.mxu0 0.0
        %737 = vmatprep.subr.mxu0 0.0
        %738 = vmatpush1.msra.mxu0 0.0
        %739 = vmatprep.subr.mxu0 0.0
        %740 = vmatpush1.msra.mxu0 0.0
        %741 = vmatprep.subr.mxu0 0.0
        %742 = vmatpush1.msra.mxu0 0.0
        %743 = vmatprep.subr.mxu0 0.0
        %744 = vmatpush1.msra.mxu0 0.0
        %745 = vmatprep.subr.mxu0 0.0
        %746 = vmatpush1.msra.mxu0 0.0
        %747 = vmatprep.subr.mxu0 0.0
        %748 = vmatpush1.msra.mxu0 0.0
        %749 = vmatprep.subr.mxu0 0.0
        %750 = vmatpush1.msra.mxu0 0.0
        %751 = vmatprep.subr.mxu0 0.0
        %752 = vmatpush1.msra.mxu0 0.0
        %753 = vmatprep.mubr.f32.mxu0 0.0
        %754 = vmatmul.mubr.f32.gmra.mrb[0].mxu0 %v678
        %v755 = vpop.f32.mrb[0].mxu0
        %v756 = vadd.f32 %v669, %v755
        %v757 = vpop.f32.mrb[0].mxu0
        %v758 = vadd.f32 %v673, %v757
        %759 = vmatprep.mubr.f32.mxu0 0.0
        %760 = vmatmul.mubr.f32.gmra.mrb[0].mxu0 %v681
        %v761 = vpop.f32.mrb[0].mxu0
        %v762 = vadd.f32 %v669, %v761
        %v763 = vpop.f32.mrb[0].mxu0
        %v764 = vadd.f32 %v673, %v763
        %765 = vmatprep.mubr.f32.mxu0 0.0
        %766 = vmatmul.mubr.f32.gmra.mrb[0].mxu0 %v684
        %v767 = vpop.f32.mrb[0].mxu0
        %v768 = vadd.f32 %v669, %v767
        %v769 = vpop.f32.mrb[0].mxu0
        %v770 = vadd.f32 %v673, %v769
        %771 = vmatprep.mubr.f32.mxu0 0.0
        %772 = vmatmul.mubr.f32.gmra.mrb[0].mxu0 %v687
        %v773 = vpop.f32.mrb[0].mxu0
        %v774 = vadd.f32 %v669, %v773
        %v775 = vpop.f32.mrb[0].mxu0
        %v776 = vadd.f32 %v673, %v775
        %777 = vdwg.mxu0
        %v778 = vld [vmem:[%s650] sm:$0xff]
        %v779 = vld [vmem:[%s650 + $0x8] sm:$0xff]
        %v780 = vld [vmem:[%s650 + $0x10] sm:$0xff]
        %v781 = vld [vmem:[%s650 + $0x18] sm:$0xff]
        %v782 = vld [vmem:[%s5] sm:$0xff]
        %v783 = vld [vmem:[%s5 + $0x8] sm:$0xff]
        %v784 = vld [vmem:[%s5 + $0x10] sm:$0xff]
        %v785 = vld [vmem:[%s5 + $0x18] sm:$0xff]
        %v786 = vld [vmem:[%s5 + $0x20] sm:$0xff]
        %v787 = vld [vmem:[%s5 + $0x28] sm:$0xff]
        %v788 = vld [vmem:[%s5 + $0x30] sm:$0xff]
        %v789 = vld [vmem:[%s5 + $0x38] sm:$0xff]
        %v790 = vld [vmem:[%s5 + $0x40] sm:$0xff]
        %v791 = vld [vmem:[%s5 + $0x48] sm:$0xff]
        %v792 = vld [vmem:[%s5 + $0x50] sm:$0xff]
        %v793 = vld [vmem:[%s5 + $0x58] sm:$0xff]
        %v794 = vld [vmem:[%s5 + $0x60] sm:$0xff]
        %v795 = vld [vmem:[%s5 + $0x68] sm:$0xff]
        %v796 = vld [vmem:[%s5 + $0x70] sm:$0xff]
        %v797 = vld [vmem:[%s5 + $0x78] sm:$0xff]
        %v798 = vld [vmem:[%s5 + $0x80] sm:$0xff]
        %v799 = vld [vmem:[%s5 + $0x88] sm:$0xff]
        %v800 = vld [vmem:[%s5 + $0x90] sm:$0xff]
        %v801 = vld [vmem:[%s5 + $0x98] sm:$0xff]
        %v802 = vld [vmem:[%s5 + $0xa0] sm:$0xff]
        %v803 = vld [vmem:[%s5 + $0xa8] sm:$0xff]
        %v804 = vld [vmem:[%s5 + $0xb0] sm:$0xff]
        %v805 = vld [vmem:[%s5 + $0xb8] sm:$0xff]
        %v806 = vld [vmem:[%s5 + $0xc0] sm:$0xff]
        %v807 = vld [vmem:[%s5 + $0xc8] sm:$0xff]
        %v808 = vld [vmem:[%s5 + $0xd0] sm:$0xff]
        %v809 = vld [vmem:[%s5 + $0xd8] sm:$0xff]
        %v810 = vld [vmem:[%s5 + $0xe0] sm:$0xff]
        %v811 = vld [vmem:[%s5 + $0xe8] sm:$0xff]
        %v812 = vld [vmem:[%s5 + $0xf0] sm:$0xff]
        %v813 = vld [vmem:[%s5 + $0xf8] sm:$0xff]
        %v814 = vld [vmem:[%s6] sm:$0x3]
        %v816 = vlaneseq
        %v817 = vshrl.u32 %v816, 7
        %v818 = vsub.s32 0, %v817
        %v819 = vrot.slane %v814, %v818
        %v820 = vlaneseq
        %v821 = vshrl.u32 %v820, 7
        %v822 = vsub.s32 1, %v821
        %v823 = vrot.slane %v814, %v822
        %826 = vmatprep.subr.mxu0 %v783
        %827 = vmatpush1.msra.mxu0 %v782
        %828 = vmatprep.subr.mxu0 %v785
        %829 = vmatpush1.msra.mxu0 %v784
        %830 = vmatprep.subr.mxu0 %v787
        %831 = vmatpush1.msra.mxu0 %v786
        %832 = vmatprep.subr.mxu0 %v789
        %833 = vmatpush1.msra.mxu0 %v788
        %834 = vmatprep.subr.mxu0 %v791
        %835 = vmatpush1.msra.mxu0 %v790
        %836 = vmatprep.subr.mxu0 %v793
        %837 = vmatpush1.msra.mxu0 %v792
        %838 = vmatprep.subr.mxu0 %v795
        %839 = vmatpush1.msra.mxu0 %v794
        %840 = vmatprep.subr.mxu0 %v797
        %841 = vmatpush1.msra.mxu0 %v796
        %842 = vmatprep.subr.mxu0 %v799
        %843 = vmatpush1.msra.mxu0 %v798
        %844 = vmatprep.subr.mxu0 %v801
        %845 = vmatpush1.msra.mxu0 %v800
        %846 = vmatprep.subr.mxu0 %v803
        %847 = vmatpush1.msra.mxu0 %v802
        %848 = vmatprep.subr.mxu0 %v805
        %849 = vmatpush1.msra.mxu0 %v804
        %850 = vmatprep.subr.mxu0 %v807
        %851 = vmatpush1.msra.mxu0 %v806
        %852 = vmatprep.subr.mxu0 %v809
        %853 = vmatpush1.msra.mxu0 %v808
        %854 = vmatprep.subr.mxu0 %v811
        %855 = vmatpush1.msra.mxu0 %v810
        %856 = vmatprep.subr.mxu0 %v813
        %857 = vmatpush1.msra.mxu0 %v812
        %858 = vmatprep.subr.mxu0 0.0
        %859 = vmatpush1.msra.mxu0 0.0
        %860 = vmatprep.subr.mxu0 0.0
        %861 = vmatpush1.msra.mxu0 0.0
        %862 = vmatprep.subr.mxu0 0.0
        %863 = vmatpush1.msra.mxu0 0.0
        %864 = vmatprep.subr.mxu0 0.0
        %865 = vmatpush1.msra.mxu0 0.0
        %866 = vmatprep.subr.mxu0 0.0
        %867 = vmatpush1.msra.mxu0 0.0
        %868 = vmatprep.subr.mxu0 0.0
        %869 = vmatpush1.msra.mxu0 0.0
        %870 = vmatprep.subr.mxu0 0.0
        %871 = vmatpush1.msra.mxu0 0.0
        %872 = vmatprep.subr.mxu0 0.0
        %873 = vmatpush1.msra.mxu0 0.0
        %874 = vmatprep.subr.mxu0 0.0
        %875 = vmatpush1.msra.mxu0 0.0
        %876 = vmatprep.subr.mxu0 0.0
        %877 = vmatpush1.msra.mxu0 0.0
        %878 = vmatprep.subr.mxu0 0.0
        %879 = vmatpush1.msra.mxu0 0.0
        %880 = vmatprep.subr.mxu0 0.0
        %881 = vmatpush1.msra.mxu0 0.0
        %882 = vmatprep.subr.mxu0 0.0
        %883 = vmatpush1.msra.mxu0 0.0
        %884 = vmatprep.subr.mxu0 0.0
        %885 = vmatpush1.msra.mxu0 0.0
        %886 = vmatprep.subr.mxu0 0.0
        %887 = vmatpush1.msra.mxu0 0.0
        %888 = vmatprep.subr.mxu0 0.0
        %889 = vmatpush1.msra.mxu0 0.0
        %890 = vmatprep.mubr.f32.mxu0 0.0
        %891 = vmatmul.mubr.f32.gmra.mrb[0].mxu0 %v778
        %v892 = vpop.f32.mrb[0].mxu0
        %v893 = vadd.f32 %v819, %v892
        %v894 = vpop.f32.mrb[0].mxu0
        %v895 = vadd.f32 %v823, %v894
        %896 = vmatprep.mubr.f32.mxu0 0.0
        %897 = vmatmul.mubr.f32.gmra.mrb[0].mxu0 %v779
        %v898 = vpop.f32.mrb[0].mxu0
        %v899 = vadd.f32 %v819, %v898
        %v900 = vpop.f32.mrb[0].mxu0
        %v901 = vadd.f32 %v823, %v900
        %902 = vmatprep.mubr.f32.mxu0 0.0
        %903 = vmatmul.mubr.f32.gmra.mrb[0].mxu0 %v780
        %v904 = vpop.f32.mrb[0].mxu0
        %v905 = vadd.f32 %v819, %v904
        %v906 = vpop.f32.mrb[0].mxu0
        %v907 = vadd.f32 %v823, %v906
        %908 = vmatprep.mubr.f32.mxu0 0.0
        %909 = vmatmul.mubr.f32.gmra.mrb[0].mxu0 %v781
        %v910 = vpop.f32.mrb[0].mxu0
        %v911 = vadd.f32 %v819, %v910
        %v912 = vpop.f32.mrb[0].mxu0
        %v913 = vadd.f32 %v823, %v912
        %914 = vdwg.mxu0
        %v915 = vadd.f32 %v756, %v893
        %v916 = vadd.f32 %v758, %v895
        %v917 = vadd.f32 %v762, %v899
        %v918 = vadd.f32 %v764, %v901
        %v919 = vadd.f32 %v768, %v905
        %v920 = vadd.f32 %v770, %v907
        %v921 = vadd.f32 %v774, %v911
        %v922 = vadd.f32 %v776, %v913
        %vm923 = vcmp.gt.f32.partialorder %v915, 0.0
        %vm924 = vcmp.gt.f32.partialorder %v916, 0.0
        %vm925 = vcmp.gt.f32.partialorder %v917, 0.0
        %vm926 = vcmp.gt.f32.partialorder %v918, 0.0
        %vm927 = vcmp.gt.f32.partialorder %v919, 0.0
        %vm928 = vcmp.gt.f32.partialorder %v920, 0.0
        %vm929 = vcmp.gt.f32.partialorder %v921, 0.0
        %vm930 = vcmp.gt.f32.partialorder %v922, 0.0
        %v931 = vmul.f32 %v915, 0.2
        %v932 = vmul.f32 %v916, 0.2
        %v933 = vmul.f32 %v917, 0.2
        %v934 = vmul.f32 %v918, 0.2
        %v935 = vmul.f32 %v919, 0.2
        %v936 = vmul.f32 %v920, 0.2
        %v937 = vmul.f32 %v921, 0.2
        %v938 = vmul.f32 %v922, 0.2
        %v939 = vsel %vm923, %v915, %v931
        %v940 = vsel %vm924, %v916, %v932
        %v941 = vsel %vm925, %v917, %v933
        %v942 = vsel %vm926, %v918, %v934
        %v943 = vsel %vm927, %v919, %v935
        %v944 = vsel %vm928, %v920, %v936
        %v945 = vsel %vm929, %v921, %v937
        %v946 = vsel %vm930, %v922, %v938
        %v947 = vld [vmem:[%s7] sm:$0xff]
        %v948 = vld [vmem:[%s7 + $0x8] sm:$0xff]
        %v949 = vld [vmem:[%s7 + $0x10] sm:$0xff]
        %v950 = vld [vmem:[%s7 + $0x18] sm:$0xff]
        %v951 = vld [vmem:[%s7 + $0x20] sm:$0xff]
        %v952 = vld [vmem:[%s7 + $0x28] sm:$0xff]
        %v953 = vld [vmem:[%s7 + $0x30] sm:$0xff]
        %v954 = vld [vmem:[%s7 + $0x38] sm:$0xff]
        %v955 = vld [vmem:[%s7 + $0x40] sm:$0xff]
        %v956 = vld [vmem:[%s7 + $0x48] sm:$0xff]
        %v957 = vld [vmem:[%s7 + $0x50] sm:$0xff]
        %v958 = vld [vmem:[%s7 + $0x58] sm:$0xff]
        %v959 = vld [vmem:[%s7 + $0x60] sm:$0xff]
        %v960 = vld [vmem:[%s7 + $0x68] sm:$0xff]
        %v961 = vld [vmem:[%s7 + $0x70] sm:$0xff]
        %v962 = vld [vmem:[%s7 + $0x78] sm:$0xff]
        %v963 = vld [vmem:[%s7 + $0x80] sm:$0xff]
        %v964 = vld [vmem:[%s7 + $0x88] sm:$0xff]
        %v965 = vld [vmem:[%s7 + $0x90] sm:$0xff]
        %v966 = vld [vmem:[%s7 + $0x98] sm:$0xff]
        %v967 = vld [vmem:[%s7 + $0xa0] sm:$0xff]
        %v968 = vld [vmem:[%s7 + $0xa8] sm:$0xff]
        %v969 = vld [vmem:[%s7 + $0xb0] sm:$0xff]
        %v970 = vld [vmem:[%s7 + $0xb8] sm:$0xff]
        %v971 = vld [vmem:[%s7 + $0xc0] sm:$0xff]
        %v972 = vld [vmem:[%s7 + $0xc8] sm:$0xff]
        %v973 = vld [vmem:[%s7 + $0xd0] sm:$0xff]
        %v974 = vld [vmem:[%s7 + $0xd8] sm:$0xff]
        %v975 = vld [vmem:[%s7 + $0xe0] sm:$0xff]
        %v976 = vld [vmem:[%s7 + $0xe8] sm:$0xff]
        %v977 = vld [vmem:[%s7 + $0xf0] sm:$0xff]
        %v978 = vld [vmem:[%s7 + $0xf8] sm:$0xff]
        %v979 = vld [vmem:[%s7 + $0x100] sm:$0xff]
        %v980 = vld [vmem:[%s7 + $0x108] sm:$0xff]
        %v981 = vld [vmem:[%s7 + $0x110] sm:$0xff]
        %v982 = vld [vmem:[%s7 + $0x118] sm:$0xff]
        %v983 = vld [vmem:[%s7 + $0x120] sm:$0xff]
        %v984 = vld [vmem:[%s7 + $0x128] sm:$0xff]
        %v985 = vld [vmem:[%s7 + $0x130] sm:$0xff]
        %v986 = vld [vmem:[%s7 + $0x138] sm:$0xff]
        %v987 = vld [vmem:[%s7 + $0x140] sm:$0xff]
        %v988 = vld [vmem:[%s7 + $0x148] sm:$0xff]
        %v989 = vld [vmem:[%s7 + $0x150] sm:$0xff]
        %v990 = vld [vmem:[%s7 + $0x158] sm:$0xff]
        %v991 = vld [vmem:[%s7 + $0x160] sm:$0xff]
        %v992 = vld [vmem:[%s7 + $0x168] sm:$0xff]
        %v993 = vld [vmem:[%s7 + $0x170] sm:$0xff]
        %v994 = vld [vmem:[%s7 + $0x178] sm:$0xff]
        %v995 = vld [vmem:[%s7 + $0x180] sm:$0xff]
        %v996 = vld [vmem:[%s7 + $0x188] sm:$0xff]
        %v997 = vld [vmem:[%s7 + $0x190] sm:$0xff]
        %v998 = vld [vmem:[%s7 + $0x198] sm:$0xff]
        %v999 = vld [vmem:[%s7 + $0x1a0] sm:$0xff]
        %v1000 = vld [vmem:[%s7 + $0x1a8] sm:$0xff]
        %v1001 = vld [vmem:[%s7 + $0x1b0] sm:$0xff]
        %v1002 = vld [vmem:[%s7 + $0x1b8] sm:$0xff]
        %v1003 = vld [vmem:[%s7 + $0x1c0] sm:$0xff]
        %v1004 = vld [vmem:[%s7 + $0x1c8] sm:$0xff]
        %v1005 = vld [vmem:[%s7 + $0x1d0] sm:$0xff]
        %v1006 = vld [vmem:[%s7 + $0x1d8] sm:$0xff]
        %v1007 = vld [vmem:[%s7 + $0x1e0] sm:$0xff]
        %v1008 = vld [vmem:[%s7 + $0x1e8] sm:$0xff]
        %v1009 = vld [vmem:[%s7 + $0x1f0] sm:$0xff]
        %v1010 = vld [vmem:[%s7 + $0x1f8] sm:$0xff]
        %1011 = vmatprep.subr.mxu0 %v948
        %1012 = vmatpush1.msra.mxu0 %v947
        %1013 = vmatprep.subr.mxu0 %v950
        %1014 = vmatpush1.msra.mxu0 %v949
        %1015 = vmatprep.subr.mxu0 %v952
        %1016 = vmatpush1.msra.mxu0 %v951
        %1017 = vmatprep.subr.mxu0 %v954
        %1018 = vmatpush1.msra.mxu0 %v953
        %1019 = vmatprep.subr.mxu0 %v956
        %1020 = vmatpush1.msra.mxu0 %v955
        %1021 = vmatprep.subr.mxu0 %v958
        %1022 = vmatpush1.msra.mxu0 %v957
        %1023 = vmatprep.subr.mxu0 %v960
        %1024 = vmatpush1.msra.mxu0 %v959
        %1025 = vmatprep.subr.mxu0 %v962
        %1026 = vmatpush1.msra.mxu0 %v961
        %1027 = vmatprep.subr.mxu0 %v964
        %1028 = vmatpush1.msra.mxu0 %v963
        %1029 = vmatprep.subr.mxu0 %v966
        %1030 = vmatpush1.msra.mxu0 %v965
        %1031 = vmatprep.subr.mxu0 %v968
        %1032 = vmatpush1.msra.mxu0 %v967
        %1033 = vmatprep.subr.mxu0 %v970
        %1034 = vmatpush1.msra.mxu0 %v969
        %1035 = vmatprep.subr.mxu0 %v972
        %1036 = vmatpush1.msra.mxu0 %v971
        %1037 = vmatprep.subr.mxu0 %v974
        %1038 = vmatpush1.msra.mxu0 %v973
        %1039 = vmatprep.subr.mxu0 %v976
        %1040 = vmatpush1.msra.mxu0 %v975
        %1041 = vmatprep.subr.mxu0 %v978
        %1042 = vmatpush1.msra.mxu0 %v977
        %1043 = vmatprep.subr.mxu0 %v980
        %1044 = vmatpush1.msra.mxu0 %v979
        %1045 = vmatprep.subr.mxu0 %v982
        %1046 = vmatpush1.msra.mxu0 %v981
        %1047 = vmatprep.subr.mxu0 %v984
        %1048 = vmatpush1.msra.mxu0 %v983
        %1049 = vmatprep.subr.mxu0 %v986
        %1050 = vmatpush1.msra.mxu0 %v985
        %1051 = vmatprep.subr.mxu0 %v988
        %1052 = vmatpush1.msra.mxu0 %v987
        %1053 = vmatprep.subr.mxu0 %v990
        %1054 = vmatpush1.msra.mxu0 %v989
        %1055 = vmatprep.subr.mxu0 %v992
        %1056 = vmatpush1.msra.mxu0 %v991
        %1057 = vmatprep.subr.mxu0 %v994
        %1058 = vmatpush1.msra.mxu0 %v993
        %1059 = vmatprep.subr.mxu0 %v996
        %1060 = vmatpush1.msra.mxu0 %v995
        %1061 = vmatprep.subr.mxu0 %v998
        %1062 = vmatpush1.msra.mxu0 %v997
        %1063 = vmatprep.subr.mxu0 %v1000
        %1064 = vmatpush1.msra.mxu0 %v999
        %1065 = vmatprep.subr.mxu0 %v1002
        %1066 = vmatpush1.msra.mxu0 %v1001
        %1067 = vmatprep.subr.mxu0 %v1004
        %1068 = vmatpush1.msra.mxu0 %v1003
        %1069 = vmatprep.subr.mxu0 %v1006
        %1070 = vmatpush1.msra.mxu0 %v1005
        %1071 = vmatprep.subr.mxu0 %v1008
        %1072 = vmatpush1.msra.mxu0 %v1007
        %1073 = vmatprep.subr.mxu0 %v1010
        %1074 = vmatpush1.msra.mxu0 %v1009
        %1075 = vmatprep.mubr.f32.mxu0 %v940
        %1076 = vmatmul.mubr.f32.gmra.mrb[0].mxu0 %v939
        %v1077 = vpop.f32.mrb[0].mxu0
        %v1078 = vadd.f32 0.0, %v1077
        %v1079 = vpop.f32.mrb[0].mxu0
        %v1080 = vadd.f32 0.0, %v1079
        %1081 = vmatprep.mubr.f32.mxu0 %v942
        %1082 = vmatmul.mubr.f32.gmra.mrb[0].mxu0 %v941
        %v1083 = vpop.f32.mrb[0].mxu0
        %v1084 = vadd.f32 0.0, %v1083
        %v1085 = vpop.f32.mrb[0].mxu0
        %v1086 = vadd.f32 0.0, %v1085
        %1087 = vmatprep.mubr.f32.mxu0 %v944
        %1088 = vmatmul.mubr.f32.gmra.mrb[0].mxu0 %v943
        %v1089 = vpop.f32.mrb[0].mxu0
        %v1090 = vadd.f32 0.0, %v1089
        %v1091 = vpop.f32.mrb[0].mxu0
        %v1092 = vadd.f32 0.0, %v1091
        %1093 = vmatprep.mubr.f32.mxu0 %v946
        %1094 = vmatmul.mubr.f32.gmra.mrb[0].mxu0 %v945
        %v1095 = vpop.f32.mrb[0].mxu0
        %v1096 = vadd.f32 0.0, %v1095
        %v1097 = vpop.f32.mrb[0].mxu0
        %v1098 = vadd.f32 0.0, %v1097
        %1099 = vdwg.mxu0
        %v1100 = vmax.f32 %v1078, %v1080
        %1101 = vmax.xlane.f32.xlu0 %v1100
        %v1102 = vpop.xlane.xlu0 %1101
        %v1103 = vmax.f32 %v1084, %v1086
        %1104 = vmax.xlane.f32.xlu0 %v1103
        %v1105 = vpop.xlane.xlu0 %1104
        %v1106 = vmax.f32 %v1090, %v1092
        %1107 = vmax.xlane.f32.xlu0 %v1106
        %v1108 = vpop.xlane.xlu0 %1107
        %v1109 = vmax.f32 %v1096, %v1098
        %1110 = vmax.xlane.f32.xlu0 %v1109
        %v1111 = vpop.xlane.xlu0 %1110
        %v1112 = vsub.f32 %v1078, %v1102
        %v1113 = vsub.f32 %v1080, %v1102
        %v1114 = vsub.f32 %v1084, %v1105
        %v1115 = vsub.f32 %v1086, %v1105
        %v1116 = vsub.f32 %v1090, %v1108
        %v1117 = vsub.f32 %v1092, %v1108
        %v1118 = vsub.f32 %v1096, %v1111
        %v1119 = vsub.f32 %v1098, %v1111
        %v1120 = vmul.f32 %v1112, 1.442695
        %v1121 = vpow.pop %v1120
        %v1122 = vmul.f32 %v1113, 1.442695
        %v1123 = vpow.pop %v1122
        %v1124 = vmul.f32 %v1114, 1.442695
        %v1125 = vpow.pop %v1124
        %v1126 = vmul.f32 %v1115, 1.442695
        %v1127 = vpow.pop %v1126
        %v1128 = vmul.f32 %v1116, 1.442695
        %v1129 = vpow.pop %v1128
        %v1130 = vmul.f32 %v1117, 1.442695
        %v1131 = vpow.pop %v1130
        %v1132 = vmul.f32 %v1118, 1.442695
        %v1133 = vpow.pop %v1132
        %v1134 = vmul.f32 %v1119, 1.442695
        %v1135 = vpow.pop %v1134
        %v1136 = vld [vmem:[%s655] sm:$0xff]
        %v1137 = vld [vmem:[%s655 + $0x8] sm:$0xff]
        %v1138 = vld [vmem:[%s655 + $0x10] sm:$0xff]
        %v1139 = vld [vmem:[%s655 + $0x18] sm:$0xff]
        %v1140 = vld [vmem:[%s655 + $0x20] sm:$0xff]
        %v1141 = vld [vmem:[%s655 + $0x28] sm:$0xff]
        %v1142 = vld [vmem:[%s655 + $0x30] sm:$0xff]
        %v1143 = vld [vmem:[%s655 + $0x38] sm:$0xff]
        %v1144 = vmul.f32 %v1121, %v1136
        %v1145 = vmul.f32 %v1123, %v1137
        %v1146 = vmul.f32 %v1125, %v1138
        %v1147 = vmul.f32 %v1127, %v1139
        %v1148 = vmul.f32 %v1129, %v1140
        %v1149 = vmul.f32 %v1131, %v1141
        %v1150 = vmul.f32 %v1133, %v1142
        %v1151 = vmul.f32 %v1135, %v1143
        %v1152 = vmul.f32 %v1144, %v893
        %v1153 = vmul.f32 %v1145, %v895
        %v1154 = vmul.f32 %v1146, %v899
        %v1155 = vmul.f32 %v1147, %v901
        %v1156 = vmul.f32 %v1148, %v905
        %v1157 = vmul.f32 %v1149, %v907
        %v1158 = vmul.f32 %v1150, %v911
        %v1159 = vmul.f32 %v1151, %v913
        %v1160 = vld [vmem:[%s8] sm:$0xff]
        %v1161 = vld [vmem:[%s8 + $0x8] sm:$0xff]
        %v1162 = vld [vmem:[%s8 + $0x10] sm:$0xff]
        %v1163 = vld [vmem:[%s8 + $0x18] sm:$0xff]
        %v1164 = vld [vmem:[%s8 + $0x20] sm:$0xff]
        %v1165 = vld [vmem:[%s8 + $0x28] sm:$0xff]
        %v1166 = vld [vmem:[%s8 + $0x30] sm:$0xff]
        %v1167 = vld [vmem:[%s8 + $0x38] sm:$0xff]
        %v1168 = vld [vmem:[%s8 + $0x40] sm:$0xff]
        %v1169 = vld [vmem:[%s8 + $0x48] sm:$0xff]
        %v1170 = vld [vmem:[%s8 + $0x50] sm:$0xff]
        %v1171 = vld [vmem:[%s8 + $0x58] sm:$0xff]
        %v1172 = vld [vmem:[%s8 + $0x60] sm:$0xff]
        %v1173 = vld [vmem:[%s8 + $0x68] sm:$0xff]
        %v1174 = vld [vmem:[%s8 + $0x70] sm:$0xff]
        %v1175 = vld [vmem:[%s8 + $0x78] sm:$0xff]
        %v1176 = vld [vmem:[%s8 + $0x80] sm:$0xff]
        %v1177 = vld [vmem:[%s8 + $0x88] sm:$0xff]
        %v1178 = vld [vmem:[%s8 + $0x90] sm:$0xff]
        %v1179 = vld [vmem:[%s8 + $0x98] sm:$0xff]
        %v1180 = vld [vmem:[%s8 + $0xa0] sm:$0xff]
        %v1181 = vld [vmem:[%s8 + $0xa8] sm:$0xff]
        %v1182 = vld [vmem:[%s8 + $0xb0] sm:$0xff]
        %v1183 = vld [vmem:[%s8 + $0xb8] sm:$0xff]
        %v1184 = vld [vmem:[%s8 + $0xc0] sm:$0xff]
        %v1185 = vld [vmem:[%s8 + $0xc8] sm:$0xff]
        %v1186 = vld [vmem:[%s8 + $0xd0] sm:$0xff]
        %v1187 = vld [vmem:[%s8 + $0xd8] sm:$0xff]
        %v1188 = vld [vmem:[%s8 + $0xe0] sm:$0xff]
        %v1189 = vld [vmem:[%s8 + $0xe8] sm:$0xff]
        %v1190 = vld [vmem:[%s8 + $0xf0] sm:$0xff]
        %v1191 = vld [vmem:[%s8 + $0xf8] sm:$0xff]
        %1192 = vmatprep.subr.mxu0 0.0
        %1193 = vmatpush1.msra.mxu0 %v1160
        %1194 = vmatprep.subr.mxu0 0.0
        %1195 = vmatpush1.msra.mxu0 %v1161
        %1196 = vmatprep.subr.mxu0 0.0
        %1197 = vmatpush1.msra.mxu0 %v1162
        %1198 = vmatprep.subr.mxu0 0.0
        %1199 = vmatpush1.msra.mxu0 %v1163
        %1200 = vmatprep.subr.mxu0 0.0
        %1201 = vmatpush1.msra.mxu0 %v1164
        %1202 = vmatprep.subr.mxu0 0.0
        %1203 = vmatpush1.msra.mxu0 %v1165
        %1204 = vmatprep.subr.mxu0 0.0
        %1205 = vmatpush1.msra.mxu0 %v1166
        %1206 = vmatprep.subr.mxu0 0.0
        %1207 = vmatpush1.msra.mxu0 %v1167
        %1208 = vmatprep.subr.mxu0 0.0
        %1209 = vmatpush1.msra.mxu0 %v1168
        %1210 = vmatprep.subr.mxu0 0.0
        %1211 = vmatpush1.msra.mxu0 %v1169
        %1212 = vmatprep.subr.mxu0 0.0
        %1213 = vmatpush1.msra.mxu0 %v1170
        %1214 = vmatprep.subr.mxu0 0.0
        %1215 = vmatpush1.msra.mxu0 %v1171
        %1216 = vmatprep.subr.mxu0 0.0
        %1217 = vmatpush1.msra.mxu0 %v1172
        %1218 = vmatprep.subr.mxu0 0.0
        %1219 = vmatpush1.msra.mxu0 %v1173
        %1220 = vmatprep.subr.mxu0 0.0
        %1221 = vmatpush1.msra.mxu0 %v1174
        %1222 = vmatprep.subr.mxu0 0.0
        %1223 = vmatpush1.msra.mxu0 %v1175
        %1224 = vmatprep.subr.mxu0 0.0
        %1225 = vmatpush1.msra.mxu0 %v1176
        %1226 = vmatprep.subr.mxu0 0.0
        %1227 = vmatpush1.msra.mxu0 %v1177
        %1228 = vmatprep.subr.mxu0 0.0
        %1229 = vmatpush1.msra.mxu0 %v1178
        %1230 = vmatprep.subr.mxu0 0.0
        %1231 = vmatpush1.msra.mxu0 %v1179
        %1232 = vmatprep.subr.mxu0 0.0
        %1233 = vmatpush1.msra.mxu0 %v1180
        %1234 = vmatprep.subr.mxu0 0.0
        %1235 = vmatpush1.msra.mxu0 %v1181
        %1236 = vmatprep.subr.mxu0 0.0
        %1237 = vmatpush1.msra.mxu0 %v1182
        %1238 = vmatprep.subr.mxu0 0.0
        %1239 = vmatpush1.msra.mxu0 %v1183
        %1240 = vmatprep.subr.mxu0 0.0
        %1241 = vmatpush1.msra.mxu0 %v1184
        %1242 = vmatprep.subr.mxu0 0.0
        %1243 = vmatpush1.msra.mxu0 %v1185
        %1244 = vmatprep.subr.mxu0 0.0
        %1245 = vmatpush1.msra.mxu0 %v1186
        %1246 = vmatprep.subr.mxu0 0.0
        %1247 = vmatpush1.msra.mxu0 %v1187
        %1248 = vmatprep.subr.mxu0 0.0
        %1249 = vmatpush1.msra.mxu0 %v1188
        %1250 = vmatprep.subr.mxu0 0.0
        %1251 = vmatpush1.msra.mxu0 %v1189
        %1252 = vmatprep.subr.mxu0 0.0
        %1253 = vmatpush1.msra.mxu0 %v1190
        %1254 = vmatprep.subr.mxu0 0.0
        %1255 = vmatpush1.msra.mxu0 %v1191
        %1256 = vmatprep.mubr.f32.mxu0 %v1153
        %1257 = vmatmul.mubr.f32.gmra.mrb[0].mxu0 %v1152
        %v1258 = vpop.f32.mrb[0].mxu0
        %v1259 = vadd.f32 0.0, %v1258
        %v1260 = vpop.f32.mrb[0].mxu0
        %1261 = vmatprep.mubr.f32.mxu0 %v1155
        %1262 = vmatmul.mubr.f32.gmra.mrb[0].mxu0 %v1154
        %v1263 = vpop.f32.mrb[0].mxu0
        %v1264 = vadd.f32 0.0, %v1263
        %v1265 = vpop.f32.mrb[0].mxu0
        %1266 = vmatprep.mubr.f32.mxu0 %v1157
        %1267 = vmatmul.mubr.f32.gmra.mrb[0].mxu0 %v1156
        %v1268 = vpop.f32.mrb[0].mxu0
        %v1269 = vadd.f32 0.0, %v1268
        %v1270 = vpop.f32.mrb[0].mxu0
        %1271 = vmatprep.mubr.f32.mxu0 %v1159
        %1272 = vmatmul.mubr.f32.gmra.mrb[0].mxu0 %v1158
        %v1273 = vpop.f32.mrb[0].mxu0
        %v1274 = vadd.f32 0.0, %v1273
        %v1275 = vpop.f32.mrb[0].mxu0
        %1276 = vmatprep.mubr.f32.mxu0 %v1145
        %1277 = vmatmul.mubr.f32.gmra.mrb[0].mxu0 %v1144
        %v1278 = vpop.f32.mrb[0].mxu0
        %v1279 = vadd.f32 0.0, %v1278
        %v1280 = vpop.f32.mrb[0].mxu0
        %1281 = vmatprep.mubr.f32.mxu0 %v1147
        %1282 = vmatmul.mubr.f32.gmra.mrb[0].mxu0 %v1146
        %v1283 = vpop.f32.mrb[0].mxu0
        %v1284 = vadd.f32 0.0, %v1283
        %v1285 = vpop.f32.mrb[0].mxu0
        %1286 = vmatprep.mubr.f32.mxu0 %v1149
        %1287 = vmatmul.mubr.f32.gmra.mrb[0].mxu0 %v1148
        %v1288 = vpop.f32.mrb[0].mxu0
        %v1289 = vadd.f32 0.0, %v1288
        %v1290 = vpop.f32.mrb[0].mxu0
        %1291 = vmatprep.mubr.f32.mxu0 %v1151
        %1292 = vmatmul.mubr.f32.gmra.mrb[0].mxu0 %v1150
        %v1293 = vpop.f32.mrb[0].mxu0
        %v1294 = vadd.f32 0.0, %v1293
        %v1295 = vpop.f32.mrb[0].mxu0
        %1296 = vdwg.mxu0
        %v1297 = vrcp.pop %v1279
        %v1298 = vrcp.pop %v1284
        %v1299 = vrcp.pop %v1289
        %v1300 = vrcp.pop %v1294
        %v1301 = vmul.f32 %v1279, %v1297
        %v1302 = vmul.f32 %v1284, %v1298
        %v1303 = vmul.f32 %v1289, %v1299
        %v1304 = vmul.f32 %v1294, %v1300
        %v1305 = vsub.f32 2.0, %v1301
        %v1306 = vsub.f32 2.0, %v1302
        %v1307 = vsub.f32 2.0, %v1303
        %v1308 = vsub.f32 2.0, %v1304
        %v1309 = vmul.f32 %v1297, %v1305
        %v1310 = vmul.f32 %v1298, %v1306
        %v1311 = vmul.f32 %v1299, %v1307
        %v1312 = vmul.f32 %v1300, %v1308
        %v1313 = vmul.f32 %v1259, %v1309
        %v1314 = vmul.f32 %v1264, %v1310
        %v1315 = vmul.f32 %v1269, %v1311
        %v1316 = vmul.f32 %v1274, %v1312
        %v1317 = vld [vmem:[%s9] sm:$0x1]
        %v1319 = vlaneseq
        %v1320 = vshrl.u32 %v1319, 7
        %v1321 = vsub.s32 0, %v1320
        %v1322 = vrot.slane %v1317, %v1321
        %v1324 = vadd.f32 %v1313, %v1322
        %v1325 = vadd.f32 %v1314, %v1322
        %v1326 = vadd.f32 %v1315, %v1322
        %v1327 = vadd.f32 %v1316, %v1322
        %v1328 = vmax.f32 %v1324, 0.0
        %v1329 = vmax.f32 %v1325, 0.0
        %v1330 = vmax.f32 %v1326, 0.0
        %v1331 = vmax.f32 %v1327, 0.0
        %vm1332 = vcmask 261120
        %v1333 = vsel %vm1332, %v1328, -inf
        %v1334 = vrot.slane %v1333, 4
        %v1335 = vmax.f32 %v1333, %v1334
        %v1336 = vrot.slane %v1335, 2
        %v1337 = vmax.f32 %v1335, %v1336
        %v1338 = vrot.slane %v1337, 1
        %v1339 = vmax.f32 %v1337, %v1338
        %v1340 = vsel %vm1332, %v1329, -inf
        %v1341 = vrot.slane %v1340, 4
        %v1342 = vmax.f32 %v1340, %v1341
        %v1343 = vrot.slane %v1342, 2
        %v1344 = vmax.f32 %v1342, %v1343
        %v1345 = vrot.slane %v1344, 1
        %v1346 = vmax.f32 %v1344, %v1345
        %v1347 = vsel %vm1332, %v1330, -inf
        %v1348 = vrot.slane %v1347, 4
        %v1349 = vmax.f32 %v1347, %v1348
        %v1350 = vrot.slane %v1349, 2
        %v1351 = vmax.f32 %v1349, %v1350
        %v1352 = vrot.slane %v1351, 1
        %v1353 = vmax.f32 %v1351, %v1352
        %v1354 = vsel %vm1332, %v1331, -inf
        %v1355 = vrot.slane %v1354, 4
        %v1356 = vmax.f32 %v1354, %v1355
        %v1357 = vrot.slane %v1356, 2
        %v1358 = vmax.f32 %v1356, %v1357
        %v1359 = vrot.slane %v1358, 1
        %v1360 = vmax.f32 %v1358, %v1359
        %v1361 = vld [vmem:[%s10] sm:$0xff]
        %v1362 = vld [vmem:[%s10 + $0x8] sm:$0xff]
        %v1363 = vld [vmem:[%s10 + $0x10] sm:$0xff]
        %v1364 = vld [vmem:[%s10 + $0x18] sm:$0xff]
        %v1365 = vld [vmem:[%s12] sm:$0x1]
        %v1367 = vlaneseq
        %v1368 = vshrl.u32 %v1367, 7
        %v1369 = vsub.s32 0, %v1368
        %v1370 = vrot.slane %v1365, %v1369
        %vm1376 = vcmask 1041409
        %v1377 = vsel %vm1376, %v1346, %v1339
        %vm1378 = vcmask 1042434
        %v1379 = vsel %vm1378, %v1353, %v1377
        %vm1380 = vcmask 1043459
        %v1381 = vsel %vm1380, %v1360, %v1379
        %v1382 = vsel %vm1332, %v1381, 0
        %1384 = vmatprep.subr.mxu0 0.0
        %1385 = vmatpush1.msra.mxu0 %v1361
        %1386 = vmatprep.subr.mxu0 0.0
        %1387 = vmatpush1.msra.mxu0 %v1362
        %1388 = vmatprep.subr.mxu0 0.0
        %1389 = vmatpush1.msra.mxu0 %v1363
        %1390 = vmatprep.subr.mxu0 0.0
        %1391 = vmatpush1.msra.mxu0 %v1364
        %1392 = vmatprep.subr.mxu0 0.0
        %1393 = vmatpush1.msra.mxu0 0.0
        %1394 = vmatprep.subr.mxu0 0.0
        %1395 = vmatpush1.msra.mxu0 0.0
        %1396 = vmatprep.subr.mxu0 0.0
        %1397 = vmatpush1.msra.mxu0 0.0
        %1398 = vmatprep.subr.mxu0 0.0
        %1399 = vmatpush1.msra.mxu0 0.0
        %1400 = vmatprep.subr.mxu0 0.0
        %1401 = vmatpush1.msra.mxu0 0.0
        %1402 = vmatprep.subr.mxu0 0.0
        %1403 = vmatpush1.msra.mxu0 0.0
        %1404 = vmatprep.subr.mxu0 0.0
        %1405 = vmatpush1.msra.mxu0 0.0
        %1406 = vmatprep.subr.mxu0 0.0
        %1407 = vmatpush1.msra.mxu0 0.0
        %1408 = vmatprep.subr.mxu0 0.0
        %1409 = vmatpush1.msra.mxu0 0.0
        %1410 = vmatprep.subr.mxu0 0.0
        %1411 = vmatpush1.msra.mxu0 0.0
        %1412 = vmatprep.subr.mxu0 0.0
        %1413 = vmatpush1.msra.mxu0 0.0
        %1414 = vmatprep.subr.mxu0 0.0
        %1415 = vmatpush1.msra.mxu0 0.0
        %1416 = vmatprep.subr.mxu0 0.0
        %1417 = vmatpush1.msra.mxu0 0.0
        %1418 = vmatprep.subr.mxu0 0.0
        %1419 = vmatpush1.msra.mxu0 0.0
        %1420 = vmatprep.subr.mxu0 0.0
        %1421 = vmatpush1.msra.mxu0 0.0
        %1422 = vmatprep.subr.mxu0 0.0
        %1423 = vmatpush1.msra.mxu0 0.0
        %1424 = vmatprep.subr.mxu0 0.0
        %1425 = vmatpush1.msra.mxu0 0.0
        %1426 = vmatprep.subr.mxu0 0.0
        %1427 = vmatpush1.msra.mxu0 0.0
        %1428 = vmatprep.subr.mxu0 0.0
        %1429 = vmatpush1.msra.mxu0 0.0
        %1430 = vmatprep.subr.mxu0 0.0
        %1431 = vmatpush1.msra.mxu0 0.0
        %1432 = vmatprep.subr.mxu0 0.0
        %1433 = vmatpush1.msra.mxu0 0.0
        %1434 = vmatprep.subr.mxu0 0.0
        %1435 = vmatpush1.msra.mxu0 0.0
        %1436 = vmatprep.subr.mxu0 0.0
        %1437 = vmatpush1.msra.mxu0 0.0
        %1438 = vmatprep.subr.mxu0 0.0
        %1439 = vmatpush1.msra.mxu0 0.0
        %1440 = vmatprep.subr.mxu0 0.0
        %1441 = vmatpush1.msra.mxu0 0.0
        %1442 = vmatprep.subr.mxu0 0.0
        %1443 = vmatpush1.msra.mxu0 0.0
        %1444 = vmatprep.subr.mxu0 0.0
        %1445 = vmatpush1.msra.mxu0 0.0
        %1446 = vmatprep.subr.mxu0 0.0
        %1447 = vmatpush1.msra.mxu0 0.0
        %1448 = vmatprep.mubr.f32.mxu0 0.0
        %1449 = vmatmul.mubr.f32.gmra.mrb[0].mxu0 %v1382
        %v1450 = vpop.f32.mrb[0].mxu0
        %v1451 = vadd.f32 %v1370, %v1450
        %v1452 = vpop.f32.mrb[0].mxu0
        %1453 = vdwg.mxu0
        %v1454 = vld [vmem:[%s11] sm:$0xff]
        %v1455 = vld [vmem:[%s11 + $0x8] sm:$0xff]
        %v1456 = vld [vmem:[%s11 + $0x10] sm:$0xff]
        %v1457 = vld [vmem:[%s11 + $0x18] sm:$0xff]
        %v1459 = vsel %vm1332, 0.0, 0
        %1461 = vmatprep.subr.mxu0 0.0
        %1462 = vmatpush1.msra.mxu0 %v1454
        %1463 = vmatprep.subr.mxu0 0.0
        %1464 = vmatpush1.msra.mxu0 %v1455
        %1465 = vmatprep.subr.mxu0 0.0
        %1466 = vmatpush1.msra.mxu0 %v1456
        %1467 = vmatprep.subr.mxu0 0.0
        %1468 = vmatpush1.msra.mxu0 %v1457
        %1469 = vmatprep.subr.mxu0 0.0
        %1470 = vmatpush1.msra.mxu0 0.0
        %1471 = vmatprep.subr.mxu0 0.0
        %1472 = vmatpush1.msra.mxu0 0.0
        %1473 = vmatprep.subr.mxu0 0.0
        %1474 = vmatpush1.msra.mxu0 0.0
        %1475 = vmatprep.subr.mxu0 0.0
        %1476 = vmatpush1.msra.mxu0 0.0
        %1477 = vmatprep.subr.mxu0 0.0
        %1478 = vmatpush1.msra.mxu0 0.0
        %1479 = vmatprep.subr.mxu0 0.0
        %1480 = vmatpush1.msra.mxu0 0.0
        %1481 = vmatprep.subr.mxu0 0.0
        %1482 = vmatpush1.msra.mxu0 0.0
        %1483 = vmatprep.subr.mxu0 0.0
        %1484 = vmatpush1.msra.mxu0 0.0
        %1485 = vmatprep.subr.mxu0 0.0
        %1486 = vmatpush1.msra.mxu0 0.0
        %1487 = vmatprep.subr.mxu0 0.0
        %1488 = vmatpush1.msra.mxu0 0.0
        %1489 = vmatprep.subr.mxu0 0.0
        %1490 = vmatpush1.msra.mxu0 0.0
        %1491 = vmatprep.subr.mxu0 0.0
        %1492 = vmatpush1.msra.mxu0 0.0
        %1493 = vmatprep.subr.mxu0 0.0
        %1494 = vmatpush1.msra.mxu0 0.0
        %1495 = vmatprep.subr.mxu0 0.0
        %1496 = vmatpush1.msra.mxu0 0.0
        %1497 = vmatprep.subr.mxu0 0.0
        %1498 = vmatpush1.msra.mxu0 0.0
        %1499 = vmatprep.subr.mxu0 0.0
        %1500 = vmatpush1.msra.mxu0 0.0
        %1501 = vmatprep.subr.mxu0 0.0
        %1502 = vmatpush1.msra.mxu0 0.0
        %1503 = vmatprep.subr.mxu0 0.0
        %1504 = vmatpush1.msra.mxu0 0.0
        %1505 = vmatprep.subr.mxu0 0.0
        %1506 = vmatpush1.msra.mxu0 0.0
        %1507 = vmatprep.subr.mxu0 0.0
        %1508 = vmatpush1.msra.mxu0 0.0
        %1509 = vmatprep.subr.mxu0 0.0
        %1510 = vmatpush1.msra.mxu0 0.0
        %1511 = vmatprep.subr.mxu0 0.0
        %1512 = vmatpush1.msra.mxu0 0.0
        %1513 = vmatprep.subr.mxu0 0.0
        %1514 = vmatpush1.msra.mxu0 0.0
        %1515 = vmatprep.subr.mxu0 0.0
        %1516 = vmatpush1.msra.mxu0 0.0
        %1517 = vmatprep.subr.mxu0 0.0
        %1518 = vmatpush1.msra.mxu0 0.0
        %1519 = vmatprep.subr.mxu0 0.0
        %1520 = vmatpush1.msra.mxu0 0.0
        %1521 = vmatprep.subr.mxu0 0.0
        %1522 = vmatpush1.msra.mxu0 0.0
        %1523 = vmatprep.subr.mxu0 0.0
        %1524 = vmatpush1.msra.mxu0 0.0
        %1525 = vmatprep.mubr.f32.mxu0 0.0
        %1526 = vmatmul.mubr.f32.gmra.mrb[0].mxu0 %v1459
        %v1527 = vpop.f32.mrb[0].mxu0
        %v1528 = vadd.f32 0.0, %v1527
        %v1529 = vpop.f32.mrb[0].mxu0
        %1530 = vdwg.mxu0
        %v1531 = vadd.f32 %v1451, %v1528
        %v1532 = vxor.u32 %v1531, 2147483648
        %v1533 = vmul.f32 %v1532, 1.442695
        %v1534 = vpow.pop %v1533
        %v1535 = vadd.f32 %v1534, 1.0
        %v1536 = vrcp.pop %v1535
        %v1537 = vmul.f32 1.0, %v1536
        %v1538 = vtanh.pop %v1531
        %v1539 = vmul.f32 %v1537, 0.0
        %1541 = vrot.lane.b32.xlu0 %v1538, 32
        %v1542 = vpop.permute.xlu0 %1541
        %v1544 = vmul.f32 %v1537, %v1542
        %1546 = vrot.lane.b32.xlu0 %v1544, 32
        %v1547 = vpop.permute.xlu0 %1546
        %v1549 = vadd.f32 %v1539, %v1547
        %v1550 = vtanh.pop %v1549
        %1552 = vrot.lane.b32.xlu0 %v1550, 32
        %v1553 = vpop.permute.xlu0 %1552
        %v1555 = vmul.f32 %v1537, %v1553
        %1557 = vrot.lane.b32.xlu0 %v1555, 64
        %v1558 = vpop.permute.xlu0 %1557
        %v1559 = vsel %vm1332, %v1558, 0
        %1561 = vmatprep.subr.mxu0 0.0
        %1562 = vmatpush1.msra.mxu0 %v1454
        %1563 = vmatprep.subr.mxu0 0.0
        %1564 = vmatpush1.msra.mxu0 %v1455
        %1565 = vmatprep.subr.mxu0 0.0
        %1566 = vmatpush1.msra.mxu0 %v1456
        %1567 = vmatprep.subr.mxu0 0.0
        %1568 = vmatpush1.msra.mxu0 %v1457
        %1569 = vmatprep.subr.mxu0 0.0
        %1570 = vmatpush1.msra.mxu0 0.0
        %1571 = vmatprep.subr.mxu0 0.0
        %1572 = vmatpush1.msra.mxu0 0.0
        %1573 = vmatprep.subr.mxu0 0.0
        %1574 = vmatpush1.msra.mxu0 0.0
        %1575 = vmatprep.subr.mxu0 0.0
        %1576 = vmatpush1.msra.mxu0 0.0
        %1577 = vmatprep.subr.mxu0 0.0
        %1578 = vmatpush1.msra.mxu0 0.0
        %1579 = vmatprep.subr.mxu0 0.0
        %1580 = vmatpush1.msra.mxu0 0.0
        %1581 = vmatprep.subr.mxu0 0.0
        %1582 = vmatpush1.msra.mxu0 0.0
        %1583 = vmatprep.subr.mxu0 0.0
        %1584 = vmatpush1.msra.mxu0 0.0
        %1585 = vmatprep.subr.mxu0 0.0
        %1586 = vmatpush1.msra.mxu0 0.0
        %1587 = vmatprep.subr.mxu0 0.0
        %1588 = vmatpush1.msra.mxu0 0.0
        %1589 = vmatprep.subr.mxu0 0.0
        %1590 = vmatpush1.msra.mxu0 0.0
        %1591 = vmatprep.subr.mxu0 0.0
        %1592 = vmatpush1.msra.mxu0 0.0
        %1593 = vmatprep.subr.mxu0 0.0
        %1594 = vmatpush1.msra.mxu0 0.0
        %1595 = vmatprep.subr.mxu0 0.0
        %1596 = vmatpush1.msra.mxu0 0.0
        %1597 = vmatprep.subr.mxu0 0.0
        %1598 = vmatpush1.msra.mxu0 0.0
        %1599 = vmatprep.subr.mxu0 0.0
        %1600 = vmatpush1.msra.mxu0 0.0
        %1601 = vmatprep.subr.mxu0 0.0
        %1602 = vmatpush1.msra.mxu0 0.0
        %1603 = vmatprep.subr.mxu0 0.0
        %1604 = vmatpush1.msra.mxu0 0.0
        %1605 = vmatprep.subr.mxu0 0.0
        %1606 = vmatpush1.msra.mxu0 0.0
        %1607 = vmatprep.subr.mxu0 0.0
        %1608 = vmatpush1.msra.mxu0 0.0
        %1609 = vmatprep.subr.mxu0 0.0
        %1610 = vmatpush1.msra.mxu0 0.0
        %1611 = vmatprep.subr.mxu0 0.0
        %1612 = vmatpush1.msra.mxu0 0.0
        %1613 = vmatprep.subr.mxu0 0.0
        %1614 = vmatpush1.msra.mxu0 0.0
        %1615 = vmatprep.subr.mxu0 0.0
        %1616 = vmatpush1.msra.mxu0 0.0
        %1617 = vmatprep.subr.mxu0 0.0
        %1618 = vmatpush1.msra.mxu0 0.0
        %1619 = vmatprep.subr.mxu0 0.0
        %1620 = vmatpush1.msra.mxu0 0.0
        %1621 = vmatprep.subr.mxu0 0.0
        %1622 = vmatpush1.msra.mxu0 0.0
        %1623 = vmatprep.subr.mxu0 0.0
        %1624 = vmatpush1.msra.mxu0 0.0
        %1625 = vmatprep.mubr.f32.mxu0 0.0
        %1626 = vmatmul.mubr.f32.gmra.mrb[0].mxu0 %v1559
        %v1627 = vpop.f32.mrb[0].mxu0
        %v1628 = vadd.f32 0.0, %v1627
        %v1629 = vpop.f32.mrb[0].mxu0
        %1630 = vdwg.mxu0
        %v1632 = vrot.slane %v1628, 7
        %v1634 = vadd.f32 %v1451, %v1632
        %v1635 = vxor.u32 %v1634, 2147483648
        %v1636 = vmul.f32 %v1635, 1.442695
        %v1637 = vpow.pop %v1636
        %v1638 = vadd.f32 %v1637, 1.0
        %v1639 = vrcp.pop %v1638
        %v1640 = vmul.f32 1.0, %v1639
        %v1641 = vtanh.pop %v1634
        %v1643 = vrot.slane %v1549, 7
        %v1645 = vmul.f32 %v1640, %v1643
        %1647 = vrot.lane.b32.xlu0 %v1641, 32
        %v1648 = vpop.permute.xlu0 %1647
        %v1650 = vmul.f32 %v1640, %v1648
        %1652 = vrot.lane.b32.xlu0 %v1650, 32
        %v1653 = vpop.permute.xlu0 %1652
        %v1655 = vadd.f32 %v1645, %v1653
        %v1656 = vtanh.pop %v1655
        %1658 = vrot.lane.b32.xlu0 %v1656, 32
        %v1659 = vpop.permute.xlu0 %1658
        %v1661 = vmul.f32 %v1640, %v1659
        %v1663 = vrot.slane %v1661, 1
        %1664 = vrot.lane.b32.xlu0 %v1663, 64
        %v1665 = vpop.permute.xlu0 %1664
        %v1666 = vsel %vm1332, %v1665, 0
        %1668 = vmatprep.subr.mxu0 0.0
        %1669 = vmatpush1.msra.mxu0 %v1454
        %1670 = vmatprep.subr.mxu0 0.0
        %1671 = vmatpush1.msra.mxu0 %v1455
        %1672 = vmatprep.subr.mxu0 0.0
        %1673 = vmatpush1.msra.mxu0 %v1456
        %1674 = vmatprep.subr.mxu0 0.0
        %1675 = vmatpush1.msra.mxu0 %v1457
        %1676 = vmatprep.subr.mxu0 0.0
        %1677 = vmatpush1.msra.mxu0 0.0
        %1678 = vmatprep.subr.mxu0 0.0
        %1679 = vmatpush1.msra.mxu0 0.0
        %1680 = vmatprep.subr.mxu0 0.0
        %1681 = vmatpush1.msra.mxu0 0.0
        %1682 = vmatprep.subr.mxu0 0.0
        %1683 = vmatpush1.msra.mxu0 0.0
        %1684 = vmatprep.subr.mxu0 0.0
        %1685 = vmatpush1.msra.mxu0 0.0
        %1686 = vmatprep.subr.mxu0 0.0
        %1687 = vmatpush1.msra.mxu0 0.0
        %1688 = vmatprep.subr.mxu0 0.0
        %1689 = vmatpush1.msra.mxu0 0.0
        %1690 = vmatprep.subr.mxu0 0.0
        %1691 = vmatpush1.msra.mxu0 0.0
        %1692 = vmatprep.subr.mxu0 0.0
        %1693 = vmatpush1.msra.mxu0 0.0
        %1694 = vmatprep.subr.mxu0 0.0
        %1695 = vmatpush1.msra.mxu0 0.0
        %1696 = vmatprep.subr.mxu0 0.0
        %1697 = vmatpush1.msra.mxu0 0.0
        %1698 = vmatprep.subr.mxu0 0.0
        %1699 = vmatpush1.msra.mxu0 0.0
        %1700 = vmatprep.subr.mxu0 0.0
        %1701 = vmatpush1.msra.mxu0 0.0
        %1702 = vmatprep.subr.mxu0 0.0
        %1703 = vmatpush1.msra.mxu0 0.0
        %1704 = vmatprep.subr.mxu0 0.0
        %1705 = vmatpush1.msra.mxu0 0.0
        %1706 = vmatprep.subr.mxu0 0.0
        %1707 = vmatpush1.msra.mxu0 0.0
        %1708 = vmatprep.subr.mxu0 0.0
        %1709 = vmatpush1.msra.mxu0 0.0
        %1710 = vmatprep.subr.mxu0 0.0
        %1711 = vmatpush1.msra.mxu0 0.0
        %1712 = vmatprep.subr.mxu0 0.0
        %1713 = vmatpush1.msra.mxu0 0.0
        %1714 = vmatprep.subr.mxu0 0.0
        %1715 = vmatpush1.msra.mxu0 0.0
        %1716 = vmatprep.subr.mxu0 0.0
        %1717 = vmatpush1.msra.mxu0 0.0
        %1718 = vmatprep.subr.mxu0 0.0
        %1719 = vmatpush1.msra.mxu0 0.0
        %1720 = vmatprep.subr.mxu0 0.0
        %1721 = vmatpush1.msra.mxu0 0.0
        %1722 = vmatprep.subr.mxu0 0.0
        %1723 = vmatpush1.msra.mxu0 0.0
        %1724 = vmatprep.subr.mxu0 0.0
        %1725 = vmatpush1.msra.mxu0 0.0
        %1726 = vmatprep.subr.mxu0 0.0
        %1727 = vmatpush1.msra.mxu0 0.0
        %1728 = vmatprep.subr.mxu0 0.0
        %1729 = vmatpush1.msra.mxu0 0.0
        %1730 = vmatprep.subr.mxu0 0.0
        %1731 = vmatpush1.msra.mxu0 0.0
        %1732 = vmatprep.mubr.f32.mxu0 0.0
        %1733 = vmatmul.mubr.f32.gmra.mrb[0].mxu0 %v1666
        %v1734 = vpop.f32.mrb[0].mxu0
        %v1735 = vadd.f32 0.0, %v1734
        %v1736 = vpop.f32.mrb[0].mxu0
        %1737 = vdwg.mxu0
        %v1739 = vrot.slane %v1735, 6
        %v1741 = vadd.f32 %v1451, %v1739
        %v1742 = vxor.u32 %v1741, 2147483648
        %v1743 = vmul.f32 %v1742, 1.442695
        %v1744 = vpow.pop %v1743
        %v1745 = vadd.f32 %v1744, 1.0
        %v1746 = vrcp.pop %v1745
        %v1747 = vmul.f32 1.0, %v1746
        %v1748 = vtanh.pop %v1741
        %v1750 = vrot.slane %v1655, 7
        %v1752 = vmul.f32 %v1747, %v1750
        %1754 = vrot.lane.b32.xlu0 %v1748, 32
        %v1755 = vpop.permute.xlu0 %1754
        %v1757 = vmul.f32 %v1747, %v1755
        %1759 = vrot.lane.b32.xlu0 %v1757, 32
        %v1760 = vpop.permute.xlu0 %1759
        %v1762 = vadd.f32 %v1752, %v1760
        %v1763 = vtanh.pop %v1762
        %1765 = vrot.lane.b32.xlu0 %v1763, 32
        %v1766 = vpop.permute.xlu0 %1765
        %v1768 = vmul.f32 %v1747, %v1766
        %v1770 = vrot.slane %v1768, 2
        %1771 = vrot.lane.b32.xlu0 %v1770, 64
        %v1772 = vpop.permute.xlu0 %1771
        %v1773 = vsel %vm1332, %v1772, 0
        %1775 = vmatprep.subr.mxu0 0.0
        %1776 = vmatpush1.msra.mxu0 %v1454
        %1777 = vmatprep.subr.mxu0 0.0
        %1778 = vmatpush1.msra.mxu0 %v1455
        %1779 = vmatprep.subr.mxu0 0.0
        %1780 = vmatpush1.msra.mxu0 %v1456
        %1781 = vmatprep.subr.mxu0 0.0
        %1782 = vmatpush1.msra.mxu0 %v1457
        %1783 = vmatprep.subr.mxu0 0.0
        %1784 = vmatpush1.msra.mxu0 0.0
        %1785 = vmatprep.subr.mxu0 0.0
        %1786 = vmatpush1.msra.mxu0 0.0
        %1787 = vmatprep.subr.mxu0 0.0
        %1788 = vmatpush1.msra.mxu0 0.0
        %1789 = vmatprep.subr.mxu0 0.0
        %1790 = vmatpush1.msra.mxu0 0.0
        %1791 = vmatprep.subr.mxu0 0.0
        %1792 = vmatpush1.msra.mxu0 0.0
        %1793 = vmatprep.subr.mxu0 0.0
        %1794 = vmatpush1.msra.mxu0 0.0
        %1795 = vmatprep.subr.mxu0 0.0
        %1796 = vmatpush1.msra.mxu0 0.0
        %1797 = vmatprep.subr.mxu0 0.0
        %1798 = vmatpush1.msra.mxu0 0.0
        %1799 = vmatprep.subr.mxu0 0.0
        %1800 = vmatpush1.msra.mxu0 0.0
        %1801 = vmatprep.subr.mxu0 0.0
        %1802 = vmatpush1.msra.mxu0 0.0
        %1803 = vmatprep.subr.mxu0 0.0
        %1804 = vmatpush1.msra.mxu0 0.0
        %1805 = vmatprep.subr.mxu0 0.0
        %1806 = vmatpush1.msra.mxu0 0.0
        %1807 = vmatprep.subr.mxu0 0.0
        %1808 = vmatpush1.msra.mxu0 0.0
        %1809 = vmatprep.subr.mxu0 0.0
        %1810 = vmatpush1.msra.mxu0 0.0
        %1811 = vmatprep.subr.mxu0 0.0
        %1812 = vmatpush1.msra.mxu0 0.0
        %1813 = vmatprep.subr.mxu0 0.0
        %1814 = vmatpush1.msra.mxu0 0.0
        %1815 = vmatprep.subr.mxu0 0.0
        %1816 = vmatpush1.msra.mxu0 0.0
        %1817 = vmatprep.subr.mxu0 0.0
        %1818 = vmatpush1.msra.mxu0 0.0
        %1819 = vmatprep.subr.mxu0 0.0
        %1820 = vmatpush1.msra.mxu0 0.0
        %1821 = vmatprep.subr.mxu0 0.0
        %1822 = vmatpush1.msra.mxu0 0.0
        %1823 = vmatprep.subr.mxu0 0.0
        %1824 = vmatpush1.msra.mxu0 0.0
        %1825 = vmatprep.subr.mxu0 0.0
        %1826 = vmatpush1.msra.mxu0 0.0
        %1827 = vmatprep.subr.mxu0 0.0
        %1828 = vmatpush1.msra.mxu0 0.0
        %1829 = vmatprep.subr.mxu0 0.0
        %1830 = vmatpush1.msra.mxu0 0.0
        %1831 = vmatprep.subr.mxu0 0.0
        %1832 = vmatpush1.msra.mxu0 0.0
        %1833 = vmatprep.subr.mxu0 0.0
        %1834 = vmatpush1.msra.mxu0 0.0
        %1835 = vmatprep.subr.mxu0 0.0
        %1836 = vmatpush1.msra.mxu0 0.0
        %1837 = vmatprep.subr.mxu0 0.0
        %1838 = vmatpush1.msra.mxu0 0.0
        %1839 = vmatprep.mubr.f32.mxu0 0.0
        %1840 = vmatmul.mubr.f32.gmra.mrb[0].mxu0 %v1773
        %v1841 = vpop.f32.mrb[0].mxu0
        %v1842 = vadd.f32 0.0, %v1841
        %v1843 = vpop.f32.mrb[0].mxu0
        %1844 = vdwg.mxu0
        %v1846 = vrot.slane %v1842, 5
        %v1848 = vadd.f32 %v1451, %v1846
        %v1849 = vxor.u32 %v1848, 2147483648
        %v1850 = vmul.f32 %v1849, 1.442695
        %v1851 = vpow.pop %v1850
        %v1852 = vadd.f32 %v1851, 1.0
        %v1853 = vrcp.pop %v1852
        %v1854 = vmul.f32 1.0, %v1853
        %v1855 = vtanh.pop %v1848
        %v1857 = vrot.slane %v1762, 7
        %v1859 = vmul.f32 %v1854, %v1857
        %1861 = vrot.lane.b32.xlu0 %v1855, 32
        %v1862 = vpop.permute.xlu0 %1861
        %v1864 = vmul.f32 %v1854, %v1862
        %1866 = vrot.lane.b32.xlu0 %v1864, 32
        %v1867 = vpop.permute.xlu0 %1866
        %v1869 = vadd.f32 %v1859, %v1867
        %v1870 = vtanh.pop %v1869
        %1872 = vrot.lane.b32.xlu0 %v1870, 32
        %v1873 = vpop.permute.xlu0 %1872
        %v1875 = vmul.f32 %v1854, %v1873
        %v1876 = vld [vmem:[%s13] sm:$0xff]
        %v1877 = vld [vmem:[%s13 + $0x8] sm:$0xff]
        %v1878 = vld [vmem:[%s13 + $0x10] sm:$0xff]
        %v1879 = vld [vmem:[%s13 + $0x18] sm:$0xff]
        %v1880 = vld [vmem:[%s14] sm:$0x1]
        %v1882 = vrot.slane %v1875, 3
        %1883 = vrot.lane.b32.xlu0 %v1882, 64
        %v1884 = vpop.permute.xlu0 %1883
        %v1885 = vsel %vm1332, %v1884, 0
        %1887 = vmatprep.subr.mxu0 0.0
        %1888 = vmatpush1.msra.mxu0 %v1876
        %1889 = vmatprep.subr.mxu0 0.0
        %1890 = vmatpush1.msra.mxu0 %v1877
        %1891 = vmatprep.subr.mxu0 0.0
        %1892 = vmatpush1.msra.mxu0 %v1878
        %1893 = vmatprep.subr.mxu0 0.0
        %1894 = vmatpush1.msra.mxu0 %v1879
        %1895 = vmatprep.subr.mxu0 0.0
        %1896 = vmatpush1.msra.mxu0 0.0
        %1897 = vmatprep.subr.mxu0 0.0
        %1898 = vmatpush1.msra.mxu0 0.0
        %1899 = vmatprep.subr.mxu0 0.0
        %1900 = vmatpush1.msra.mxu0 0.0
        %1901 = vmatprep.subr.mxu0 0.0
        %1902 = vmatpush1.msra.mxu0 0.0
        %1903 = vmatprep.subr.mxu0 0.0
        %1904 = vmatpush1.msra.mxu0 0.0
        %1905 = vmatprep.subr.mxu0 0.0
        %1906 = vmatpush1.msra.mxu0 0.0
        %1907 = vmatprep.subr.mxu0 0.0
        %1908 = vmatpush1.msra.mxu0 0.0
        %1909 = vmatprep.subr.mxu0 0.0
        %1910 = vmatpush1.msra.mxu0 0.0
        %1911 = vmatprep.subr.mxu0 0.0
        %1912 = vmatpush1.msra.mxu0 0.0
        %1913 = vmatprep.subr.mxu0 0.0
        %1914 = vmatpush1.msra.mxu0 0.0
        %1915 = vmatprep.subr.mxu0 0.0
        %1916 = vmatpush1.msra.mxu0 0.0
        %1917 = vmatprep.subr.mxu0 0.0
        %1918 = vmatpush1.msra.mxu0 0.0
        %1919 = vmatprep.subr.mxu0 0.0
        %1920 = vmatpush1.msra.mxu0 0.0
        %1921 = vmatprep.subr.mxu0 0.0
        %1922 = vmatpush1.msra.mxu0 0.0
        %1923 = vmatprep.subr.mxu0 0.0
        %1924 = vmatpush1.msra.mxu0 0.0
        %1925 = vmatprep.subr.mxu0 0.0
        %1926 = vmatpush1.msra.mxu0 0.0
        %1927 = vmatprep.subr.mxu0 0.0
        %1928 = vmatpush1.msra.mxu0 0.0
        %1929 = vmatprep.subr.mxu0 0.0
        %1930 = vmatpush1.msra.mxu0 0.0
        %1931 = vmatprep.subr.mxu0 0.0
        %1932 = vmatpush1.msra.mxu0 0.0
        %1933 = vmatprep.subr.mxu0 0.0
        %1934 = vmatpush1.msra.mxu0 0.0
        %1935 = vmatprep.subr.mxu0 0.0
        %1936 = vmatpush1.msra.mxu0 0.0
        %1937 = vmatprep.subr.mxu0 0.0
        %1938 = vmatpush1.msra.mxu0 0.0
        %1939 = vmatprep.subr.mxu0 0.0
        %1940 = vmatpush1.msra.mxu0 0.0
        %1941 = vmatprep.subr.mxu0 0.0
        %1942 = vmatpush1.msra.mxu0 0.0
        %1943 = vmatprep.subr.mxu0 0.0
        %1944 = vmatpush1.msra.mxu0 0.0
        %1945 = vmatprep.subr.mxu0 0.0
        %1946 = vmatpush1.msra.mxu0 0.0
        %1947 = vmatprep.subr.mxu0 0.0
        %1948 = vmatpush1.msra.mxu0 0.0
        %1949 = vmatprep.subr.mxu0 0.0
        %1950 = vmatpush1.msra.mxu0 0.0
        %1951 = vmatprep.mubr.f32.mxu0 0.0
        %1952 = vmatmul.mubr.f32.gmra.mrb[0].mxu0 %v1885
        %v1953 = vpop.f32.mrb[0].mxu0
        %v1954 = vadd.f32 %v1880, %v1953
        %v1955 = vpop.f32.mrb[0].mxu0
        %1956 = vdwg.mxu0
        %v1957 = vmax.f32 %v1954, 0.0
        %v1958 = vld [vmem:[%s15] sm:$0xff]
        %v1959 = vld [vmem:[%s15 + $0x8] sm:$0xff]
        %v1960 = vld [vmem:[%s15 + $0x10] sm:$0xff]
        %v1961 = vld [vmem:[%s15 + $0x18] sm:$0xff]
        %v1962 = vld [vmem:[%s15 + $0x20] sm:$0xff]
        %v1963 = vld [vmem:[%s15 + $0x28] sm:$0xff]
        %v1964 = vld [vmem:[%s15 + $0x30] sm:$0xff]
        %v1965 = vld [vmem:[%s15 + $0x38] sm:$0xff]
        %v1966 = vld [vmem:[%s15 + $0x40] sm:$0xff]
        %v1967 = vld [vmem:[%s15 + $0x48] sm:$0xff]
        %v1968 = vld [vmem:[%s15 + $0x50] sm:$0xff]
        %v1969 = vld [vmem:[%s15 + $0x58] sm:$0xff]
        %v1970 = vld [vmem:[%s15 + $0x60] sm:$0xff]
        %v1971 = vld [vmem:[%s15 + $0x68] sm:$0xff]
        %v1972 = vld [vmem:[%s15 + $0x70] sm:$0xff]
        %v1973 = vld [vmem:[%s15 + $0x78] sm:$0xff]
        %v1974 = vld [vmem:[%s16] sm:$0x1]
        %1975 = vmatprep.subr.mxu0 0.0
        %1976 = vmatpush1.msra.mxu0 %v1958
        %1977 = vmatprep.subr.mxu0 0.0
        %1978 = vmatpush1.msra.mxu0 %v1959
        %1979 = vmatprep.subr.mxu0 0.0
        %1980 = vmatpush1.msra.mxu0 %v1960
        %1981 = vmatprep.subr.mxu0 0.0
        %1982 = vmatpush1.msra.mxu0 %v1961
        %1983 = vmatprep.subr.mxu0 0.0
        %1984 = vmatpush1.msra.mxu0 %v1962
        %1985 = vmatprep.subr.mxu0 0.0
        %1986 = vmatpush1.msra.mxu0 %v1963
        %1987 = vmatprep.subr.mxu0 0.0
        %1988 = vmatpush1.msra.mxu0 %v1964
        %1989 = vmatprep.subr.mxu0 0.0
        %1990 = vmatpush1.msra.mxu0 %v1965
        %1991 = vmatprep.subr.mxu0 0.0
        %1992 = vmatpush1.msra.mxu0 %v1966
        %1993 = vmatprep.subr.mxu0 0.0
        %1994 = vmatpush1.msra.mxu0 %v1967
        %1995 = vmatprep.subr.mxu0 0.0
        %1996 = vmatpush1.msra.mxu0 %v1968
        %1997 = vmatprep.subr.mxu0 0.0
        %1998 = vmatpush1.msra.mxu0 %v1969
        %1999 = vmatprep.subr.mxu0 0.0
        %2000 = vmatpush1.msra.mxu0 %v1970
        %2001 = vmatprep.subr.mxu0 0.0
        %2002 = vmatpush1.msra.mxu0 %v1971
        %2003 = vmatprep.subr.mxu0 0.0
        %2004 = vmatpush1.msra.mxu0 %v1972
        %2005 = vmatprep.subr.mxu0 0.0
        %2006 = vmatpush1.msra.mxu0 %v1973
        %2007 = vmatprep.subr.mxu0 0.0
        %2008 = vmatpush1.msra.mxu0 0.0
        %2009 = vmatprep.subr.mxu0 0.0
        %2010 = vmatpush1.msra.mxu0 0.0
        %2011 = vmatprep.subr.mxu0 0.0
        %2012 = vmatpush1.msra.mxu0 0.0
        %2013 = vmatprep.subr.mxu0 0.0
        %2014 = vmatpush1.msra.mxu0 0.0
        %2015 = vmatprep.subr.mxu0 0.0
        %2016 = vmatpush1.msra.mxu0 0.0
        %2017 = vmatprep.subr.mxu0 0.0
        %2018 = vmatpush1.msra.mxu0 0.0
        %2019 = vmatprep.subr.mxu0 0.0
        %2020 = vmatpush1.msra.mxu0 0.0
        %2021 = vmatprep.subr.mxu0 0.0
        %2022 = vmatpush1.msra.mxu0 0.0
        %2023 = vmatprep.subr.mxu0 0.0
        %2024 = vmatpush1.msra.mxu0 0.0
        %2025 = vmatprep.subr.mxu0 0.0
        %2026 = vmatpush1.msra.mxu0 0.0
        %2027 = vmatprep.subr.mxu0 0.0
        %2028 = vmatpush1.msra.mxu0 0.0
        %2029 = vmatprep.subr.mxu0 0.0
        %2030 = vmatpush1.msra.mxu0 0.0
        %2031 = vmatprep.subr.mxu0 0.0
        %2032 = vmatpush1.msra.mxu0 0.0
        %2033 = vmatprep.subr.mxu0 0.0
        %2034 = vmatpush1.msra.mxu0 0.0
        %2035 = vmatprep.subr.mxu0 0.0
        %2036 = vmatpush1.msra.mxu0 0.0
        %2037 = vmatprep.subr.mxu0 0.0
        %2038 = vmatpush1.msra.mxu0 0.0
        %2039 = vmatprep.mubr.f32.mxu0 0.0
        %2040 = vmatmul.mubr.f32.gmra.mrb[0].mxu0 %v1957
        %v2041 = vpop.f32.mrb[0].mxu0
        %v2042 = vadd.f32 %v1974, %v2041
        %v2043 = vpop.f32.mrb[0].mxu0
        %2044 = vdwg.mxu0
        %vm2045 = vcmask 32768
        %v2046 = vsel %vm2045, %v2042, 0.0
        %2047 = vadd.xlane.f32.xlu0 %v2046
        %v2048 = vpop.xlane.xlu0 %2047
        %v2049 = vrcp.pop 5.0
        %v2050 = vmul.f32 %v2048, %v2049
        %v2051 = vsub.f32 %v2042, %v2050
        %2053 = vset.pattern.permute.xlu0 5
        %2054 = vperm.xlu0 %2053, %v2042
        %v2055 = vpop.permute.xlu0 %2054
        %v2057 = vadd.f32 %v2051, %v2055
        %2058 = vst.msk [vmem:[%s628] sm:$0x1] %vm2045, %v2057
        %2059 = vrot.lane.b32.xlu0 %v1875, 64
        %v2060 = vpop.permute.xlu0 %2059
        %vm2062 = vcmask 257027
        %2063 = vst.msk [vmem:[%s634 - $0x3] sm:$0x8] %vm2062, %v2060
        %2065 = vrot.lane.b32.xlu0 %v1869, 96
        %v2066 = vpop.permute.xlu0 %2065
        %2068 = vst.msk [vmem:[%s640 - $0x3] sm:$0x8] %vm2062, %v2066
        %s2069 = sand.u32 %s417, 1
        %s2070 = scalar_lea.sflag [#allocation3], %s2069
        %s2071 = sand.u32 %s417, 1
        %s2072 = scalar_lea.vmem [#allocation2], %s2071
        %s2073 = sand.u32 %s37, 1
        %s2074 = scalar_lea.sflag [#allocation5], %s2073
        %s2075 = sand.u32 %s443, 1
        %s2076 = scalar_lea.vmem [#allocation4], %s2075
        %s2077 = sand.u32 %s37, 1
        %s2078 = scalar_lea.sflag [#allocation5], %s2077
        %s2079 = sand.u32 %s469, 1
        %s2080 = scalar_lea.vmem [#allocation6], %s2079
        // Predicated region
        $region89: #{forward.1} parent=87 // pred_check
          %p2081 = pneg %p427
        $region90: #{forward.1} parent=87 // pred_check_branch
          %2083 = sbr.rel (%p2081) target = $region92
        $region91: #{forward.1} parent=87 // pred_region
          %s2085 = ssub.s32 16, 16
          %2086 = vsyncadd %s2070, %s2085
          %s2087 = smul.addr %s37, 16
          %s2088 = scalar_lea.hbm %s17, %s2087
          %s2090 = sshll.u32 %s2072, 4
          %s2091 = int_to_ptr.vmem [resolvable:$true] %s2090
          %2093 = dma.vmem_to_hbm [thread:$0]  %s2091, 16, %s2088, %s2070
        $region92: #{forward.1} parent=87 // pred_fallthru
          _
        // Predicated region
        $region93: #{forward.1} parent=87 // pred_check
          %p2094 = pneg %p453
        $region94: #{forward.1} parent=87 // pred_check_branch
          %2096 = sbr.rel (%p2094) target = $region96
        $region95: #{forward.1} parent=87 // pred_region
          %s2098 = ssub.s32 16, 16
          %2099 = vsyncadd %s2074, %s2098
          %s2100 = smul.addr %s37, 16
          %s2101 = scalar_lea.hbm %s18, %s2100
          %s2103 = sshll.u32 %s2076, 4
          %s2104 = int_to_ptr.vmem [resolvable:$true] %s2103
          %2106 = dma.vmem_to_hbm [thread:$0]  %s2104, 16, %s2101, %s2074
        $region96: #{forward.1} parent=87 // pred_fallthru
          _
        // Predicated region
        $region97: #{forward.1} parent=87 // pred_check
          %p2107 = pneg %p479
        $region98: #{forward.1} parent=87 // pred_check_branch
          %2109 = sbr.rel (%p2107) target = $region100
        $region99: #{forward.1} parent=87 // pred_region
          %s2111 = ssub.s32 16, 16
          %2112 = vsyncadd %s2078, %s2111
          %s2113 = smul.addr %s37, 16
          %s2114 = scalar_lea.hbm %s19, %s2113
          %s2116 = sshll.u32 %s2080, 4
          %s2117 = int_to_ptr.vmem [resolvable:$true] %s2116
          %2119 = dma.vmem_to_hbm [thread:$0]  %s2117, 16, %s2114, %s2078
        $region100: #{forward.1} parent=87 // pred_fallthru
          _
      $region88: #{forward.1} parent=5 // pred_fallthru
        _
      %p2120 = scmp.le.s32.totalorder 2, %s32
      // Predicated region
      $region101: #{forward.1} parent=5 // pred_check
        %p2121 = pneg %p2120
      $region102: #{forward.1} parent=5 // pred_check_branch
        %2123 = sbr.rel (%p2121) target = $region104
      $region103: #{forward.1} parent=5 // pred_region
        %s2124 = ssub.s32 %s32, 2
        // Predicated region
        $region105: #{forward.1} parent=103 // pred_check
          %p2125 = pneg %p433
        $region106: #{forward.1} parent=103 // pred_check_branch
          %2127 = sbr.rel (%p2125) target = $region108
        $region107: #{forward.1} parent=103 // pred_region
          %s2128 = sand.u32 %s418, 1
          %s2129 = scalar_lea.sflag [#allocation3], %s2128
          %s2130 = sand.u32 %s418, 1
          %s2131 = scalar_lea.vmem [#allocation2], %s2130
          %2132 = dma.done %s2129, 16
        $region108: #{forward.1} parent=103 // pred_fallthru
          _
        // Predicated region
        $region109: #{forward.1} parent=103 // pred_check
          %p2133 = pneg %p459
        $region110: #{forward.1} parent=103 // pred_check_branch
          %2135 = sbr.rel (%p2133) target = $region112
        $region111: #{forward.1} parent=103 // pred_region
          %s2136 = sand.u32 %s38, 1
          %s2137 = scalar_lea.sflag [#allocation5], %s2136
          %s2138 = sand.u32 %s444, 1
          %s2139 = scalar_lea.vmem [#allocation4], %s2138
          %2140 = dma.done %s2137, 16
        $region112: #{forward.1} parent=103 // pred_fallthru
          _
        // Predicated region
        $region113: #{forward.1} parent=103 // pred_check
          %p2141 = pneg %p485
        $region114: #{forward.1} parent=103 // pred_check_branch
          %2143 = sbr.rel (%p2141) target = $region116
        $region115: #{forward.1} parent=103 // pred_region
          %s2144 = sand.u32 %s38, 1
          %s2145 = scalar_lea.sflag [#allocation5], %s2144
          %s2146 = sand.u32 %s470, 1
          %s2147 = scalar_lea.vmem [#allocation6], %s2146
          %2148 = dma.done %s2145, 16
        $region116: #{forward.1} parent=103 // pred_fallthru
          _
      $region104: #{forward.1} parent=5 // pred_fallthru
        _
    $region6: #{forward.1} parent=1 // loop_footer
      %s36 = sadd.s32 1, %s32
    $region7: #{forward.1} parent=1 // loop_footer_branch
      %31 = sbr.rel target = $region3
    $region8: #{forward.1} parent=1 // loop_exit
      _
    %2149 = vsyncpa [#allocation3], 1
    %s2150 = scalar_lea.sflag [#allocation3], 1
    %2151 = vsyncpa %s2150, 1
    %2152 = vsyncpa [#allocation5], 1
    %s2153 = scalar_lea.sflag [#allocation5], 1
    %2154 = vsyncpa %s2153, 1

</llo_original>
